<compile_context>
chip_gen: v7x
topology: tpu7x:2x2x1
jax: 0.10.0
libtpu: 0.0.40
codegen_flags: <defaults>
</compile_context>

<pallas_src>
import functools

import jax
import jax.numpy as jnp
from jax.experimental import pallas as pl
from jax.experimental.pallas import tpu as pltpu


_PLANE_UV = ((1, 2), (0, 2), (0, 1))  # per plane: (grid_x -> W axis, grid_y -> H axis)


def _reflect_align_corners(ix, span):
    """PyTorch grid_sample 'reflection' padding with align_corners=True.

    Reflects unnormalized pixel coords into [0, span] where span = size - 1.
    """
    x = jnp.abs(ix)
    q = jnp.floor(x / span)
    extra = x - q * span
    q_is_even = (q - 2.0 * jnp.floor(q * 0.5)) < 0.5
    out = jnp.where(q_is_even, extra, span - extra)
    return jnp.clip(out, 0.0, span)


def _triplanar_kernel(coords_ref, x_ramp_ref, y_ramp_ref, sel_ref, fm_ref,
                      out_ref, *, size):
    # coords_ref: [3, tp]            f32  (xyz on sublanes, points on lanes)
    # x_ramp_ref: [k_pad, 1]         f32  (W index of each plane column; rows >= size
    #                                      can never be within 1 of ix -> weight 0)
    # y_ramp_ref: [fs, 1]            f32  (H index of each flattened (f, y) row)
    # sel_ref:    [fdim, fs]         param dtype (sel[f, r] = 1 iff r // size == f)
    # fm_ref:     [3, fs, k_pad]     param dtype (rows = f*size + y, lanes = W/x)
    # out_ref:    [3, fdim, tp]      f32  (lane-dense stores)
    span = float(size - 1)

    x_ramp = x_ramp_ref[...]          # [k_pad, 1]
    y_ramp = y_ramp_ref[...]          # [fs, 1]
    sel = sel_ref[...]                # [fdim, fs]

    # Static unroll over the 3 planes; per-plane intermediates are modest
    # (~1.5 MB at tp=1024) so vreg/VMEM pressure stays low.
    for p, (ui, vi) in enumerate(_PLANE_UV):
        u = coords_ref[ui:ui + 1, :]  # [1, tp]  -> W-axis coordinate
        v = coords_ref[vi:vi + 1, :]  # [1, tp]  -> H-axis coordinate

        ix = _reflect_align_corners((u + 1.0) * (0.5 * span), span)  # in [0, span]
        iy = _reflect_align_corners((v + 1.0) * (0.5 * span), span)

        # Tent weights == exact align_corners bilinear weights (the clamped
        # ix == span corner gives weight 1 at the last texel, 0 elsewhere).
        wx = jnp.maximum(1.0 - jnp.abs(x_ramp - ix), 0.0)            # [k_pad, tp]
        wy = jnp.maximum(1.0 - jnp.abs(y_ramp - iy), 0.0)            # [fs, tp]

        plane = fm_ref[p]                                            # [fs, k_pad]
        # MXU #1: contract over W  ->  tmp[(f, y), point]
        tmp = jnp.dot(plane, wx.astype(plane.dtype),
                      preferred_element_type=jnp.float32)            # [fs, tp]
        # Apply y-weights elementwise, then MXU #2 (tiny constant matmul):
        # segment-sum over y per feature channel.
        feat = jnp.dot(sel, (tmp * wy).astype(sel.dtype),
                       preferred_element_type=jnp.float32)           # [fdim, tp]
        out_ref[p, :, :] = feat.astype(out_ref.dtype)


def _choose_tp(num_points, tp_max=1024):
    """Points per grid step.

    Large tiles amortize the ~0.35 us per-grid-step overhead; once there is
    enough work we prefer >= 2 grid steps so both v7x TensorCores get fed.
    """
    p128 = ((num_points + 127) // 128) * 128
    if p128 > tp_max:
        return tp_max                      # >= 2 steps automatically
    if p128 >= 512:
        return ((p128 // 2 + 127) // 128) * 128   # split into 2 steps
    return max(128, p128)


def _triplanar_sample(coords_t, fm_flat, x_ramp, y_ramp, sel, *, size, fdim,
                      tp=None):
    """coords_t: [3, P] f32 -> features [3, fdim, P] f32."""
    P = coords_t.shape[1]
    fs = fm_flat.shape[1]
    k_pad = fm_flat.shape[2]
    if tp is None:
        tp = _choose_tp(P)
    p_pad = ((P + tp - 1) // tp) * tp
    coords_p = jnp.pad(coords_t.astype(jnp.float32), ((0, 0), (0, p_pad - P)))

    kernel = functools.partial(_triplanar_kernel, size=size)
    out = pl.pallas_call(
        kernel,
        out_shape=jax.ShapeDtypeStruct((3, fdim, p_pad), jnp.float32),
        grid_spec=pltpu.PrefetchScalarGridSpec(
            num_scalar_prefetch=0,
            grid=(p_pad // tp,),
            in_specs=[
                pl.BlockSpec((3, tp), lambda i: (0, i)),
                # Grid-invariant constants / plane stack: constant index_map,
                # fetched once and kept resident across steps.
                pl.BlockSpec((k_pad, 1), lambda i: (0, 0)),
                pl.BlockSpec((fs, 1), lambda i: (0, 0)),
                pl.BlockSpec((fdim, fs), lambda i: (0, 0)),
                # TODO(synk): for very large fsize/fdim (plane stack approaching
                # the v7x 64 MiB VMEM ceiling) add a row-dim grid axis with an
                # accumulator instead of keeping the whole stack resident.
                pl.BlockSpec((3, fs, k_pad), lambda i: (0, 0, 0)),
            ],
            out_specs=pl.BlockSpec((3, fdim, tp), lambda i: (0, 0, i)),
        ),
        compiler_params=pltpu.CompilerParams(
            dimension_semantics=("parallel",)),
    )(coords_p, x_ramp, y_ramp, sel, fm_flat)
    return out[:, :, :P]


class TriplanarFeatureVolume:
    """JAX/Pallas port of wisp's TriplanarFeatureVolume forward pass."""

    def __init__(self, fdim, fsize, std, bias, key, param_dtype=jnp.bfloat16):
        assert fsize >= 1, "fsize must be >= 1 (span = fsize would be 0)"
        self.fdim = fdim
        self.fsize = fsize
        self.size = fsize + 1
        kx, ky, kz = jax.random.split(key, 3)
        shape = (1, fdim, self.size, self.size)       # torch NCHW parameter layout
        self.fmx = jax.random.normal(kx, shape, jnp.float32) * std + bias
        self.fmy = jax.random.normal(ky, shape, jnp.float32) * std + bias
        self.fmz = jax.random.normal(kz, shape, jnp.float32) * std + bias

        # Kernel-friendly layout: rows = (feature, y) merged, lanes = x (W),
        # padded only to a multiple of 16 (bf16 sublane tile) — the padded
        # columns are structurally zero-weight so they never contribute.
        size = self.size
        k_pad = max(16, ((size + 15) // 16) * 16)
        self.k_pad = k_pad
        fm = jnp.concatenate([self.fmx, self.fmy, self.fmz], axis=0)   # [3, fdim, H, W]
        fm = fm.reshape(3, fdim * size, size)                          # [3, fdim*H, W]
        fm = jnp.pad(fm, ((0, 0), (0, 0), (0, k_pad - size)))
        # Precision trade: bf16 planes/weights (~0.4% rel. error) by default.
        self.fm_flat = fm.astype(param_dtype)                          # [3, fdim*H, k_pad]

        # Grid-invariant constants, hoisted out of the kernel.
        fs = fdim * size
        ridx = jnp.arange(fs)
        self.x_ramp = jnp.arange(k_pad, dtype=jnp.float32)[:, None]    # [k_pad, 1]
        self.y_ramp = (ridx % size).astype(jnp.float32)[:, None]       # [fs, 1]
        self.sel = (jnp.arange(fdim)[:, None] == (ridx[None, :] // size)
                    ).astype(param_dtype)                              # [fdim, fs]

    def _sample(self, coords_t):
        return _triplanar_sample(coords_t, self.fm_flat, self.x_ramp,
                                 self.y_ramp, self.sel,
                                 size=self.size, fdim=self.fdim)

    def __call__(self, x):
        # TODO(synk): downstream consumers that accept channels-first [3, fdim, P]
        # output could skip the epilogue transpose (an extra HBM<->HBM pass).
        if x.ndim == 3:
            N, S, _ = x.shape
            coords_t = x.reshape(N * S, 3).T                            # [3, N*S] lane-dense
            feats = self._sample(coords_t)                              # [3, fdim, N*S]
            return feats.transpose(2, 0, 1).reshape(N, S, 3, self.fdim)  # [N, S, 3, fdim]
        else:
            # [batch, 3] path. (The torch reference's branch has a `padding_modes`
            # typo and would raise; we implement its intended semantics.)
            # TODO(synk): torch code for this branch is unreachable as written.
            feats = self._sample(x.T)                                   # [3, fdim, B]
            return feats.transpose(2, 0, 1)                             # [B, 3, fdim]


def _reference_forward(x, fmx, fmy, fmz, fsize, fdim):
    """Pure-JAX (non-Pallas) reference of the same grid_sample semantics (f32)."""
    size = fsize + 1
    span = float(size - 1)
    N, S, _ = x.shape
    pts = x.reshape(-1, 3)
    planes = jnp.stack([fmx[0], fmy[0], fmz[0]], axis=0)  # [3, fdim, H, W]
    outs = []
    for p, (ui, vi) in enumerate(_PLANE_UV):
        u = pts[:, ui]
        v = pts[:, vi]
        ix = _reflect_align_corners((u + 1.0) * 0.5 * span, span)
        iy = _reflect_align_corners((v + 1.0) * 0.5 * span, span)
        x0 = jnp.floor(ix)
        y0 = jnp.floor(iy)
        wx1 = ix - x0
        wy1 = iy - y0
        x0i = x0.astype(jnp.int32)
        y0i = y0.astype(jnp.int32)
        x1i = jnp.minimum(x0i + 1, size - 1)
        y1i = jnp.minimum(y0i + 1, size - 1)
        plane = planes[p]

        def g(yi, xi):
            return plane[:, yi, xi]  # [fdim, P]

        val = (g(y0i, x0i) * ((1 - wy1) * (1 - wx1))
               + g(y0i, x1i) * ((1 - wy1) * wx1)
               + g(y1i, x0i) * (wy1 * (1 - wx1))
               + g(y1i, x1i) * (wy1 * wx1))
        outs.append(val.T)                       # [P, fdim]
    feats = jnp.stack(outs, axis=1)              # [P, 3, fdim]
    return feats.reshape(N, S, 3, fdim)


if __name__ == "__main__":
    fdim, fsize, std, bias = 8, 16, 0.1, 0.0
    key = jax.random.PRNGKey(0)
    k_params, k_x1, k_x2, k_x3 = jax.random.split(key, 4)

    vol = TriplanarFeatureVolume(fdim, fsize, std, bias, k_params)

    # 1) Small [N, S, 3] path; coords slightly outside [-1, 1] so the reflection
    #    padding path is exercised.
    x = jax.random.uniform(k_x1, (2, 8, 3), jnp.float32, minval=-1.2, maxval=1.2)
    out = jax.block_until_ready(vol(x))
    assert out.shape == (2, 8, 3, fdim), out.shape
    ref = _reference_forward(x, vol.fmx, vol.fmy, vol.fmz, fsize, fdim)
    err = float(jnp.max(jnp.abs(out - ref)))
    assert jnp.allclose(out, ref, atol=1e-2, rtol=1e-2), err

    # 2) Medium size: exercises the multi-grid-step path (tp=1024 -> 2 steps)
    #    and the padded point tail.
    xm = jax.random.uniform(k_x2, (2, 600, 3), jnp.float32, minval=-1.3, maxval=1.3)
    outm = jax.block_until_ready(vol(xm))
    assert outm.shape == (2, 600, 3, fdim), outm.shape
    refm = _reference_forward(xm, vol.fmx, vol.fmy, vol.fmz, fsize, fdim)
    errm = float(jnp.max(jnp.abs(outm - refm)))
    assert jnp.allclose(outm, refm, atol=1e-2, rtol=1e-2), errm

    # 3) [batch, 3] path.
    xb = jax.random.uniform(k_x3, (5, 3), jnp.float32, minval=-1.0, maxval=1.0)
    outb = jax.block_until_ready(vol(xb))
    assert outb.shape == (5, 3, fdim), outb.shape
    refb = _reference_forward(xb[:, None, :], vol.fmx, vol.fmy, vol.fmz,
                              fsize, fdim)[:, 0]
    errb = float(jnp.max(jnp.abs(outb - refb)))
    assert jnp.allclose(outb, refb, atol=1e-2, rtol=1e-2), errb

    print("KERNEL_OK")
</pallas_src>

<mosaic_0001>
module attributes {stable_mosaic.version = 11 : i64} {
  func.func @_triplanar_kernel(%arg0: i32, %arg1: memref<3x128xf32, #tpu.memory_space<vmem>>, %arg2: memref<32x1xf32, #tpu.memory_space<vmem>>, %arg3: memref<136x1xf32, #tpu.memory_space<vmem>>, %arg4: memref<8x136xbf16, #tpu.memory_space<vmem>>, %arg5: memref<3x136x32xbf16, #tpu.memory_space<vmem>>, %arg6: memref<3x8x128xf32, #tpu.memory_space<vmem>>) attributes {dimension_semantics = [#tpu.dimension_semantics<parallel>], iteration_bounds = array<i64: 1>, scalar_prefetch = 0 : i64, scratch_operands = 0 : i64, tpu.core_type = #tpu.core_type<tc>, window_params = [{transform_indices = @transform_0, window_bounds = array<i64: 3, 128>}, {pipeline_mode = #tpu.pipeline_mode<synchronous>, transform_indices = @transform_1, window_bounds = array<i64: 32, 1>}, {pipeline_mode = #tpu.pipeline_mode<synchronous>, transform_indices = @transform_2, window_bounds = array<i64: 136, 1>}, {pipeline_mode = #tpu.pipeline_mode<synchronous>, transform_indices = @transform_3, window_bounds = array<i64: 8, 136>}, {pipeline_mode = #tpu.pipeline_mode<synchronous>, transform_indices = @transform_4, window_bounds = array<i64: 3, 136, 32>}, {transform_indices = @transform_5, window_bounds = array<i64: 3, 8, 128>}]} {
    %c0 = arith.constant 0 : index
    %c0_0 = arith.constant 0 : index
    %0 = vector.load %arg2[%c0, %c0_0] : memref<32x1xf32, #tpu.memory_space<vmem>>, vector<32x1xf32>
    %c0_1 = arith.constant 0 : index
    %c0_2 = arith.constant 0 : index
    %1 = vector.load %arg3[%c0_1, %c0_2] : memref<136x1xf32, #tpu.memory_space<vmem>>, vector<136x1xf32>
    %c0_3 = arith.constant 0 : index
    %c0_4 = arith.constant 0 : index
    %2 = vector.load %arg4[%c0_3, %c0_4] : memref<8x136xbf16, #tpu.memory_space<vmem>>, vector<8x136xbf16>
    %c1 = arith.constant 1 : index
    %c0_5 = arith.constant 0 : index
    %3 = vector.load %arg1[%c1, %c0_5] : memref<3x128xf32, #tpu.memory_space<vmem>>, vector<1x128xf32>
    %c2 = arith.constant 2 : index
    %c0_6 = arith.constant 0 : index
    %4 = vector.load %arg1[%c2, %c0_6] : memref<3x128xf32, #tpu.memory_space<vmem>>, vector<1x128xf32>
    %cst = arith.constant 1.000000e+00 : f32
    %5 = vector.broadcast %cst : f32 to vector<1x128xf32>
    %6 = arith.addf %3, %5 : vector<1x128xf32>
    %cst_7 = arith.constant 8.000000e+00 : f32
    %7 = vector.broadcast %cst_7 : f32 to vector<1x128xf32>
    %8 = arith.mulf %6, %7 : vector<1x128xf32>
    %9 = math.absf %8 : vector<1x128xf32>
    %cst_8 = arith.constant 1.600000e+01 : f32
    %10 = vector.broadcast %cst_8 : f32 to vector<1x128xf32>
    %11 = arith.divf %9, %10 : vector<1x128xf32>
    %12 = math.floor %11 : vector<1x128xf32>
    %cst_9 = arith.constant 1.600000e+01 : f32
    %13 = vector.broadcast %cst_9 : f32 to vector<1x128xf32>
    %14 = arith.mulf %12, %13 : vector<1x128xf32>
    %15 = arith.subf %9, %14 : vector<1x128xf32>
    %cst_10 = arith.constant 5.000000e-01 : f32
    %16 = vector.broadcast %cst_10 : f32 to vector<1x128xf32>
    %17 = arith.mulf %12, %16 : vector<1x128xf32>
    %18 = math.floor %17 : vector<1x128xf32>
    %cst_11 = arith.constant 2.000000e+00 : f32
    %19 = vector.broadcast %cst_11 : f32 to vector<1x128xf32>
    %20 = arith.mulf %19, %18 : vector<1x128xf32>
    %21 = arith.subf %12, %20 : vector<1x128xf32>
    %cst_12 = arith.constant 5.000000e-01 : f32
    %22 = vector.broadcast %cst_12 : f32 to vector<1x128xf32>
    %23 = arith.cmpf olt, %21, %22 : vector<1x128xf32>
    %cst_13 = arith.constant 1.600000e+01 : f32
    %24 = vector.broadcast %cst_13 : f32 to vector<1x128xf32>
    %25 = arith.subf %24, %15 : vector<1x128xf32>
    %26 = arith.select %23, %15, %25 : vector<1x128xi1>, vector<1x128xf32>
    %cst_14 = arith.constant 0.000000e+00 : f32
    %cst_15 = arith.constant 1.600000e+01 : f32
    %27 = vector.broadcast %cst_14 : f32 to vector<1x128xf32>
    %28 = arith.maximumf %27, %26 : vector<1x128xf32>
    %29 = vector.broadcast %cst_15 : f32 to vector<1x128xf32>
    %30 = arith.minimumf %29, %28 : vector<1x128xf32>
    %cst_16 = arith.constant 1.000000e+00 : f32
    %31 = vector.broadcast %cst_16 : f32 to vector<1x128xf32>
    %32 = arith.addf %4, %31 : vector<1x128xf32>
    %cst_17 = arith.constant 8.000000e+00 : f32
    %33 = vector.broadcast %cst_17 : f32 to vector<1x128xf32>
    %34 = arith.mulf %32, %33 : vector<1x128xf32>
    %35 = math.absf %34 : vector<1x128xf32>
    %cst_18 = arith.constant 1.600000e+01 : f32
    %36 = vector.broadcast %cst_18 : f32 to vector<1x128xf32>
    %37 = arith.divf %35, %36 : vector<1x128xf32>
    %38 = math.floor %37 : vector<1x128xf32>
    %cst_19 = arith.constant 1.600000e+01 : f32
    %39 = vector.broadcast %cst_19 : f32 to vector<1x128xf32>
    %40 = arith.mulf %38, %39 : vector<1x128xf32>
    %41 = arith.subf %35, %40 : vector<1x128xf32>
    %cst_20 = arith.constant 5.000000e-01 : f32
    %42 = vector.broadcast %cst_20 : f32 to vector<1x128xf32>
    %43 = arith.mulf %38, %42 : vector<1x128xf32>
    %44 = math.floor %43 : vector<1x128xf32>
    %cst_21 = arith.constant 2.000000e+00 : f32
    %45 = vector.broadcast %cst_21 : f32 to vector<1x128xf32>
    %46 = arith.mulf %45, %44 : vector<1x128xf32>
    %47 = arith.subf %38, %46 : vector<1x128xf32>
    %cst_22 = arith.constant 5.000000e-01 : f32
    %48 = vector.broadcast %cst_22 : f32 to vector<1x128xf32>
    %49 = arith.cmpf olt, %47, %48 : vector<1x128xf32>
    %cst_23 = arith.constant 1.600000e+01 : f32
    %50 = vector.broadcast %cst_23 : f32 to vector<1x128xf32>
    %51 = arith.subf %50, %41 : vector<1x128xf32>
    %52 = arith.select %49, %41, %51 : vector<1x128xi1>, vector<1x128xf32>
    %cst_24 = arith.constant 0.000000e+00 : f32
    %cst_25 = arith.constant 1.600000e+01 : f32
    %53 = vector.broadcast %cst_24 : f32 to vector<1x128xf32>
    %54 = arith.maximumf %53, %52 : vector<1x128xf32>
    %55 = vector.broadcast %cst_25 : f32 to vector<1x128xf32>
    %56 = arith.minimumf %55, %54 : vector<1x128xf32>
    %57 = vector.broadcast %0 : vector<32x1xf32> to vector<32x128xf32>
    %58 = vector.broadcast %30 : vector<1x128xf32> to vector<32x128xf32>
    %59 = arith.subf %57, %58 : vector<32x128xf32>
    %60 = math.absf %59 : vector<32x128xf32>
    %cst_26 = arith.constant 1.000000e+00 : f32
    %61 = vector.broadcast %cst_26 : f32 to vector<32x128xf32>
    %62 = arith.subf %61, %60 : vector<32x128xf32>
    %cst_27 = arith.constant 0.000000e+00 : f32
    %63 = vector.broadcast %cst_27 : f32 to vector<32x128xf32>
    %64 = arith.maximumf %62, %63 : vector<32x128xf32>
    %65 = vector.broadcast %1 : vector<136x1xf32> to vector<136x128xf32>
    %66 = vector.broadcast %56 : vector<1x128xf32> to vector<136x128xf32>
    %67 = arith.subf %65, %66 : vector<136x128xf32>
    %68 = math.absf %67 : vector<136x128xf32>
    %cst_28 = arith.constant 1.000000e+00 : f32
    %69 = vector.broadcast %cst_28 : f32 to vector<136x128xf32>
    %70 = arith.subf %69, %68 : vector<136x128xf32>
    %cst_29 = arith.constant 0.000000e+00 : f32
    %71 = vector.broadcast %cst_29 : f32 to vector<136x128xf32>
    %72 = arith.maximumf %70, %71 : vector<136x128xf32>
    %c0_30 = arith.constant 0 : index
    %c0_31 = arith.constant 0 : index
    %c0_32 = arith.constant 0 : index
    %73 = vector.load %arg5[%c0_30, %c0_31, %c0_32] : memref<3x136x32xbf16, #tpu.memory_space<vmem>>, vector<1x136x32xbf16>
    %74 = vector.shape_cast %73 : vector<1x136x32xbf16> to vector<136x32xbf16>
    %75 = arith.truncf %64 : vector<32x128xf32> to vector<32x128xbf16>
    %cst_33 = arith.constant dense<0.000000e+00> : vector<136x128xf32>
    %76 = tpu.matmul %74, %75, %cst_33 {dimension_numbers = #tpu.dot_dimension_numbers<[1], [0], [0], [1], [0, 0, 1, 1], [], []>} : vector<136x32xbf16>, vector<32x128xbf16>, vector<136x128xf32> -> vector<136x128xf32>
    %77 = arith.mulf %76, %72 : vector<136x128xf32>
    %78 = arith.truncf %77 : vector<136x128xf32> to vector<136x128xbf16>
    %cst_34 = arith.constant dense<0.000000e+00> : vector<8x128xf32>
    %79 = tpu.matmul %2, %78, %cst_34 {dimension_numbers = #tpu.dot_dimension_numbers<[1], [0], [0], [1], [0, 0, 1, 1], [], []>} : vector<8x136xbf16>, vector<136x128xbf16>, vector<8x128xf32> -> vector<8x128xf32>
    %c0_35 = arith.constant 0 : index
    %c0_36 = arith.constant 0 : index
    %c0_37 = arith.constant 0 : index
    %80 = vector.load %arg6[%c0_35, %c0_36, %c0_37] : memref<3x8x128xf32, #tpu.memory_space<vmem>>, vector<1x8x128xf32>
    %81 = vector.shape_cast %80 : vector<1x8x128xf32> to vector<8x128xf32>
    %82 = vector.shape_cast %79 : vector<8x128xf32> to vector<1x8x128xf32>
    tpu.vector_store %arg6[%c0_35, %c0_36, %c0_37], %82 {strides = array<i32>} : memref<3x8x128xf32, #tpu.memory_space<vmem>>, vector<1x8x128xf32>,
    %c0_38 = arith.constant 0 : index
    %c0_39 = arith.constant 0 : index
    %83 = vector.load %arg1[%c0_38, %c0_39] : memref<3x128xf32, #tpu.memory_space<vmem>>, vector<1x128xf32>
    %c2_40 = arith.constant 2 : index
    %c0_41 = arith.constant 0 : index
    %84 = vector.load %arg1[%c2_40, %c0_41] : memref<3x128xf32, #tpu.memory_space<vmem>>, vector<1x128xf32>
    %cst_42 = arith.constant 1.000000e+00 : f32
    %85 = vector.broadcast %cst_42 : f32 to vector<1x128xf32>
    %86 = arith.addf %83, %85 : vector<1x128xf32>
    %cst_43 = arith.constant 8.000000e+00 : f32
    %87 = vector.broadcast %cst_43 : f32 to vector<1x128xf32>
    %88 = arith.mulf %86, %87 : vector<1x128xf32>
    %89 = math.absf %88 : vector<1x128xf32>
    %cst_44 = arith.constant 1.600000e+01 : f32
    %90 = vector.broadcast %cst_44 : f32 to vector<1x128xf32>
    %91 = arith.divf %89, %90 : vector<1x128xf32>
    %92 = math.floor %91 : vector<1x128xf32>
    %cst_45 = arith.constant 1.600000e+01 : f32
    %93 = vector.broadcast %cst_45 : f32 to vector<1x128xf32>
    %94 = arith.mulf %92, %93 : vector<1x128xf32>
    %95 = arith.subf %89, %94 : vector<1x128xf32>
    %cst_46 = arith.constant 5.000000e-01 : f32
    %96 = vector.broadcast %cst_46 : f32 to vector<1x128xf32>
    %97 = arith.mulf %92, %96 : vector<1x128xf32>
    %98 = math.floor %97 : vector<1x128xf32>
    %cst_47 = arith.constant 2.000000e+00 : f32
    %99 = vector.broadcast %cst_47 : f32 to vector<1x128xf32>
    %100 = arith.mulf %99, %98 : vector<1x128xf32>
    %101 = arith.subf %92, %100 : vector<1x128xf32>
    %cst_48 = arith.constant 5.000000e-01 : f32
    %102 = vector.broadcast %cst_48 : f32 to vector<1x128xf32>
    %103 = arith.cmpf olt, %101, %102 : vector<1x128xf32>
    %cst_49 = arith.constant 1.600000e+01 : f32
    %104 = vector.broadcast %cst_49 : f32 to vector<1x128xf32>
    %105 = arith.subf %104, %95 : vector<1x128xf32>
    %106 = arith.select %103, %95, %105 : vector<1x128xi1>, vector<1x128xf32>
    %cst_50 = arith.constant 0.000000e+00 : f32
    %cst_51 = arith.constant 1.600000e+01 : f32
    %107 = vector.broadcast %cst_50 : f32 to vector<1x128xf32>
    %108 = arith.maximumf %107, %106 : vector<1x128xf32>
    %109 = vector.broadcast %cst_51 : f32 to vector<1x128xf32>
    %110 = arith.minimumf %109, %108 : vector<1x128xf32>
    %cst_52 = arith.constant 1.000000e+00 : f32
    %111 = vector.broadcast %cst_52 : f32 to vector<1x128xf32>
    %112 = arith.addf %84, %111 : vector<1x128xf32>
    %cst_53 = arith.constant 8.000000e+00 : f32
    %113 = vector.broadcast %cst_53 : f32 to vector<1x128xf32>
    %114 = arith.mulf %112, %113 : vector<1x128xf32>
    %115 = math.absf %114 : vector<1x128xf32>
    %cst_54 = arith.constant 1.600000e+01 : f32
    %116 = vector.broadcast %cst_54 : f32 to vector<1x128xf32>
    %117 = arith.divf %115, %116 : vector<1x128xf32>
    %118 = math.floor %117 : vector<1x128xf32>
    %cst_55 = arith.constant 1.600000e+01 : f32
    %119 = vector.broadcast %cst_55 : f32 to vector<1x128xf32>
    %120 = arith.mulf %118, %119 : vector<1x128xf32>
    %121 = arith.subf %115, %120 : vector<1x128xf32>
    %cst_56 = arith.constant 5.000000e-01 : f32
    %122 = vector.broadcast %cst_56 : f32 to vector<1x128xf32>
    %123 = arith.mulf %118, %122 : vector<1x128xf32>
    %124 = math.floor %123 : vector<1x128xf32>
    %cst_57 = arith.constant 2.000000e+00 : f32
    %125 = vector.broadcast %cst_57 : f32 to vector<1x128xf32>
    %126 = arith.mulf %125, %124 : vector<1x128xf32>
    %127 = arith.subf %118, %126 : vector<1x128xf32>
    %cst_58 = arith.constant 5.000000e-01 : f32
    %128 = vector.broadcast %cst_58 : f32 to vector<1x128xf32>
    %129 = arith.cmpf olt, %127, %128 : vector<1x128xf32>
    %cst_59 = arith.constant 1.600000e+01 : f32
    %130 = vector.broadcast %cst_59 : f32 to vector<1x128xf32>
    %131 = arith.subf %130, %121 : vector<1x128xf32>
    %132 = arith.select %129, %121, %131 : vector<1x128xi1>, vector<1x128xf32>
    %cst_60 = arith.constant 0.000000e+00 : f32
    %cst_61 = arith.constant 1.600000e+01 : f32
    %133 = vector.broadcast %cst_60 : f32 to vector<1x128xf32>
    %134 = arith.maximumf %133, %132 : vector<1x128xf32>
    %135 = vector.broadcast %cst_61 : f32 to vector<1x128xf32>
    %136 = arith.minimumf %135, %134 : vector<1x128xf32>
    %137 = vector.broadcast %0 : vector<32x1xf32> to vector<32x128xf32>
    %138 = vector.broadcast %110 : vector<1x128xf32> to vector<32x128xf32>
    %139 = arith.subf %137, %138 : vector<32x128xf32>
    %140 = math.absf %139 : vector<32x128xf32>
    %cst_62 = arith.constant 1.000000e+00 : f32
    %141 = vector.broadcast %cst_62 : f32 to vector<32x128xf32>
    %142 = arith.subf %141, %140 : vector<32x128xf32>
    %cst_63 = arith.constant 0.000000e+00 : f32
    %143 = vector.broadcast %cst_63 : f32 to vector<32x128xf32>
    %144 = arith.maximumf %142, %143 : vector<32x128xf32>
    %145 = vector.broadcast %1 : vector<136x1xf32> to vector<136x128xf32>
    %146 = vector.broadcast %136 : vector<1x128xf32> to vector<136x128xf32>
    %147 = arith.subf %145, %146 : vector<136x128xf32>
    %148 = math.absf %147 : vector<136x128xf32>
    %cst_64 = arith.constant 1.000000e+00 : f32
    %149 = vector.broadcast %cst_64 : f32 to vector<136x128xf32>
    %150 = arith.subf %149, %148 : vector<136x128xf32>
    %cst_65 = arith.constant 0.000000e+00 : f32
    %151 = vector.broadcast %cst_65 : f32 to vector<136x128xf32>
    %152 = arith.maximumf %150, %151 : vector<136x128xf32>
    %c1_66 = arith.constant 1 : index
    %c0_67 = arith.constant 0 : index
    %c0_68 = arith.constant 0 : index
    %153 = vector.load %arg5[%c1_66, %c0_67, %c0_68] : memref<3x136x32xbf16, #tpu.memory_space<vmem>>, vector<1x136x32xbf16>
    %154 = vector.shape_cast %153 : vector<1x136x32xbf16> to vector<136x32xbf16>
    %155 = arith.truncf %144 : vector<32x128xf32> to vector<32x128xbf16>
    %cst_69 = arith.constant dense<0.000000e+00> : vector<136x128xf32>
    %156 = tpu.matmul %154, %155, %cst_69 {dimension_numbers = #tpu.dot_dimension_numbers<[1], [0], [0], [1], [0, 0, 1, 1], [], []>} : vector<136x32xbf16>, vector<32x128xbf16>, vector<136x128xf32> -> vector<136x128xf32>
    %157 = arith.mulf %156, %152 : vector<136x128xf32>
    %158 = arith.truncf %157 : vector<136x128xf32> to vector<136x128xbf16>
    %cst_70 = arith.constant dense<0.000000e+00> : vector<8x128xf32>
    %159 = tpu.matmul %2, %158, %cst_70 {dimension_numbers = #tpu.dot_dimension_numbers<[1], [0], [0], [1], [0, 0, 1, 1], [], []>} : vector<8x136xbf16>, vector<136x128xbf16>, vector<8x128xf32> -> vector<8x128xf32>
    %c1_71 = arith.constant 1 : index
    %c0_72 = arith.constant 0 : index
    %c0_73 = arith.constant 0 : index
    %160 = vector.load %arg6[%c1_71, %c0_72, %c0_73] : memref<3x8x128xf32, #tpu.memory_space<vmem>>, vector<1x8x128xf32>
    %161 = vector.shape_cast %160 : vector<1x8x128xf32> to vector<8x128xf32>
    %162 = vector.shape_cast %159 : vector<8x128xf32> to vector<1x8x128xf32>
    tpu.vector_store %arg6[%c1_71, %c0_72, %c0_73], %162 {strides = array<i32>} : memref<3x8x128xf32, #tpu.memory_space<vmem>>, vector<1x8x128xf32>,
    %c0_74 = arith.constant 0 : index
    %c0_75 = arith.constant 0 : index
    %163 = vector.load %arg1[%c0_74, %c0_75] : memref<3x128xf32, #tpu.memory_space<vmem>>, vector<1x128xf32>
    %c1_76 = arith.constant 1 : index
    %c0_77 = arith.constant 0 : index
    %164 = vector.load %arg1[%c1_76, %c0_77] : memref<3x128xf32, #tpu.memory_space<vmem>>, vector<1x128xf32>
    %cst_78 = arith.constant 1.000000e+00 : f32
    %165 = vector.broadcast %cst_78 : f32 to vector<1x128xf32>
    %166 = arith.addf %163, %165 : vector<1x128xf32>
    %cst_79 = arith.constant 8.000000e+00 : f32
    %167 = vector.broadcast %cst_79 : f32 to vector<1x128xf32>
    %168 = arith.mulf %166, %167 : vector<1x128xf32>
    %169 = math.absf %168 : vector<1x128xf32>
    %cst_80 = arith.constant 1.600000e+01 : f32
    %170 = vector.broadcast %cst_80 : f32 to vector<1x128xf32>
    %171 = arith.divf %169, %170 : vector<1x128xf32>
    %172 = math.floor %171 : vector<1x128xf32>
    %cst_81 = arith.constant 1.600000e+01 : f32
    %173 = vector.broadcast %cst_81 : f32 to vector<1x128xf32>
    %174 = arith.mulf %172, %173 : vector<1x128xf32>
    %175 = arith.subf %169, %174 : vector<1x128xf32>
    %cst_82 = arith.constant 5.000000e-01 : f32
    %176 = vector.broadcast %cst_82 : f32 to vector<1x128xf32>
    %177 = arith.mulf %172, %176 : vector<1x128xf32>
    %178 = math.floor %177 : vector<1x128xf32>
    %cst_83 = arith.constant 2.000000e+00 : f32
    %179 = vector.broadcast %cst_83 : f32 to vector<1x128xf32>
    %180 = arith.mulf %179, %178 : vector<1x128xf32>
    %181 = arith.subf %172, %180 : vector<1x128xf32>
    %cst_84 = arith.constant 5.000000e-01 : f32
    %182 = vector.broadcast %cst_84 : f32 to vector<1x128xf32>
    %183 = arith.cmpf olt, %181, %182 : vector<1x128xf32>
    %cst_85 = arith.constant 1.600000e+01 : f32
    %184 = vector.broadcast %cst_85 : f32 to vector<1x128xf32>
    %185 = arith.subf %184, %175 : vector<1x128xf32>
    %186 = arith.select %183, %175, %185 : vector<1x128xi1>, vector<1x128xf32>
    %cst_86 = arith.constant 0.000000e+00 : f32
    %cst_87 = arith.constant 1.600000e+01 : f32
    %187 = vector.broadcast %cst_86 : f32 to vector<1x128xf32>
    %188 = arith.maximumf %187, %186 : vector<1x128xf32>
    %189 = vector.broadcast %cst_87 : f32 to vector<1x128xf32>
    %190 = arith.minimumf %189, %188 : vector<1x128xf32>
    %cst_88 = arith.constant 1.000000e+00 : f32
    %191 = vector.broadcast %cst_88 : f32 to vector<1x128xf32>
    %192 = arith.addf %164, %191 : vector<1x128xf32>
    %cst_89 = arith.constant 8.000000e+00 : f32
    %193 = vector.broadcast %cst_89 : f32 to vector<1x128xf32>
    %194 = arith.mulf %192, %193 : vector<1x128xf32>
    %195 = math.absf %194 : vector<1x128xf32>
    %cst_90 = arith.constant 1.600000e+01 : f32
    %196 = vector.broadcast %cst_90 : f32 to vector<1x128xf32>
    %197 = arith.divf %195, %196 : vector<1x128xf32>
    %198 = math.floor %197 : vector<1x128xf32>
    %cst_91 = arith.constant 1.600000e+01 : f32
    %199 = vector.broadcast %cst_91 : f32 to vector<1x128xf32>
    %200 = arith.mulf %198, %199 : vector<1x128xf32>
    %201 = arith.subf %195, %200 : vector<1x128xf32>
    %cst_92 = arith.constant 5.000000e-01 : f32
    %202 = vector.broadcast %cst_92 : f32 to vector<1x128xf32>
    %203 = arith.mulf %198, %202 : vector<1x128xf32>
    %204 = math.floor %203 : vector<1x128xf32>
    %cst_93 = arith.constant 2.000000e+00 : f32
    %205 = vector.broadcast %cst_93 : f32 to vector<1x128xf32>
    %206 = arith.mulf %205, %204 : vector<1x128xf32>
    %207 = arith.subf %198, %206 : vector<1x128xf32>
    %cst_94 = arith.constant 5.000000e-01 : f32
    %208 = vector.broadcast %cst_94 : f32 to vector<1x128xf32>
    %209 = arith.cmpf olt, %207, %208 : vector<1x128xf32>
    %cst_95 = arith.constant 1.600000e+01 : f32
    %210 = vector.broadcast %cst_95 : f32 to vector<1x128xf32>
    %211 = arith.subf %210, %201 : vector<1x128xf32>
    %212 = arith.select %209, %201, %211 : vector<1x128xi1>, vector<1x128xf32>
    %cst_96 = arith.constant 0.000000e+00 : f32
    %cst_97 = arith.constant 1.600000e+01 : f32
    %213 = vector.broadcast %cst_96 : f32 to vector<1x128xf32>
    %214 = arith.maximumf %213, %212 : vector<1x128xf32>
    %215 = vector.broadcast %cst_97 : f32 to vector<1x128xf32>
    %216 = arith.minimumf %215, %214 : vector<1x128xf32>
    %217 = vector.broadcast %0 : vector<32x1xf32> to vector<32x128xf32>
    %218 = vector.broadcast %190 : vector<1x128xf32> to vector<32x128xf32>
    %219 = arith.subf %217, %218 : vector<32x128xf32>
    %220 = math.absf %219 : vector<32x128xf32>
    %cst_98 = arith.constant 1.000000e+00 : f32
    %221 = vector.broadcast %cst_98 : f32 to vector<32x128xf32>
    %222 = arith.subf %221, %220 : vector<32x128xf32>
    %cst_99 = arith.constant 0.000000e+00 : f32
    %223 = vector.broadcast %cst_99 : f32 to vector<32x128xf32>
    %224 = arith.maximumf %222, %223 : vector<32x128xf32>
    %225 = vector.broadcast %1 : vector<136x1xf32> to vector<136x128xf32>
    %226 = vector.broadcast %216 : vector<1x128xf32> to vector<136x128xf32>
    %227 = arith.subf %225, %226 : vector<136x128xf32>
    %228 = math.absf %227 : vector<136x128xf32>
    %cst_100 = arith.constant 1.000000e+00 : f32
    %229 = vector.broadcast %cst_100 : f32 to vector<136x128xf32>
    %230 = arith.subf %229, %228 : vector<136x128xf32>
    %cst_101 = arith.constant 0.000000e+00 : f32
    %231 = vector.broadcast %cst_101 : f32 to vector<136x128xf32>
    %232 = arith.maximumf %230, %231 : vector<136x128xf32>
    %c2_102 = arith.constant 2 : index
    %c0_103 = arith.constant 0 : index
    %c0_104 = arith.constant 0 : index
    %233 = vector.load %arg5[%c2_102, %c0_103, %c0_104] : memref<3x136x32xbf16, #tpu.memory_space<vmem>>, vector<1x136x32xbf16>
    %234 = vector.shape_cast %233 : vector<1x136x32xbf16> to vector<136x32xbf16>
    %235 = arith.truncf %224 : vector<32x128xf32> to vector<32x128xbf16>
    %cst_105 = arith.constant dense<0.000000e+00> : vector<136x128xf32>
    %236 = tpu.matmul %234, %235, %cst_105 {dimension_numbers = #tpu.dot_dimension_numbers<[1], [0], [0], [1], [0, 0, 1, 1], [], []>} : vector<136x32xbf16>, vector<32x128xbf16>, vector<136x128xf32> -> vector<136x128xf32>
    %237 = arith.mulf %236, %232 : vector<136x128xf32>
    %238 = arith.truncf %237 : vector<136x128xf32> to vector<136x128xbf16>
    %cst_106 = arith.constant dense<0.000000e+00> : vector<8x128xf32>
    %239 = tpu.matmul %2, %238, %cst_106 {dimension_numbers = #tpu.dot_dimension_numbers<[1], [0], [0], [1], [0, 0, 1, 1], [], []>} : vector<8x136xbf16>, vector<136x128xbf16>, vector<8x128xf32> -> vector<8x128xf32>
    %c2_107 = arith.constant 2 : index
    %c0_108 = arith.constant 0 : index
    %c0_109 = arith.constant 0 : index
    %240 = vector.load %arg6[%c2_107, %c0_108, %c0_109] : memref<3x8x128xf32, #tpu.memory_space<vmem>>, vector<1x8x128xf32>
    %241 = vector.shape_cast %240 : vector<1x8x128xf32> to vector<8x128xf32>
    %242 = vector.shape_cast %239 : vector<8x128xf32> to vector<1x8x128xf32>
    tpu.vector_store %arg6[%c2_107, %c0_108, %c0_109], %242 {strides = array<i32>} : memref<3x8x128xf32, #tpu.memory_space<vmem>>, vector<1x8x128xf32>,
    return
  }
  func.func @transform_0(%arg0: i32) -> (i32, i32) {
    %c0_i32 = arith.constant 0 : i32
    %c0_i32_0 = arith.constant 0 : i32
    return %c0_i32, %arg0 : i32, i32
  }
  func.func @transform_1(%arg0: i32) -> (i32, i32) {
    %c0_i32 = arith.constant 0 : i32
    %c0_i32_0 = arith.constant 0 : i32
    %c0_i32_1 = arith.constant 0 : i32
    return %c0_i32, %c0_i32_0 : i32, i32
  }
  func.func @transform_2(%arg0: i32) -> (i32, i32) {
    %c0_i32 = arith.constant 0 : i32
    %c0_i32_0 = arith.constant 0 : i32
    %c0_i32_1 = arith.constant 0 : i32
    return %c0_i32, %c0_i32_0 : i32, i32
  }
  func.func @transform_3(%arg0: i32) -> (i32, i32) {
    %c0_i32 = arith.constant 0 : i32
    %c0_i32_0 = arith.constant 0 : i32
    %c0_i32_1 = arith.constant 0 : i32
    return %c0_i32, %c0_i32_0 : i32, i32
  }
  func.func @transform_4(%arg0: i32) -> (i32, i32, i32) {
    %c0_i32 = arith.constant 0 : i32
    %c0_i32_0 = arith.constant 0 : i32
    %c0_i32_1 = arith.constant 0 : i32
    %c0_i32_2 = arith.constant 0 : i32
    return %c0_i32, %c0_i32_0, %c0_i32_1 : i32, i32, i32
  }
  func.func @transform_5(%arg0: i32) -> (i32, i32, i32) {
    %c0_i32 = arith.constant 0 : i32
    %c0_i32_0 = arith.constant 0 : i32
    %c0_i32_1 = arith.constant 0 : i32
    return %c0_i32, %c0_i32_0, %arg0 : i32, i32, i32
  }
}

</mosaic_0001>

<llo_original>
// kernel: tpu_custom_call.1
$region0: #{tpu_custom_call.1}
  #allocation0 [shape = 'u32[]', space=smem, size = 0x4, offset = 0x4, fixed_abs, tag = 'smem constant byte address 0x4 - core index']
  #allocation1 [shape = 'u32[144,128]{1,0:T(1,128)}', space=vmem, size = 0x12000, scoped, tag = 'internal scratch']
  %s0 = inlined_call_operand.vmem [shape: f32[3,128], index: 0, kind: input, shape index: {}]
  %s1 = inlined_call_operand.vmem [shape: f32[32,1], index: 1, kind: input, shape index: {}]
  %s2 = inlined_call_operand.vmem [shape: f32[136,1], index: 2, kind: input, shape index: {}]
  %s3 = inlined_call_operand.vmem [shape: bf16[8,136], index: 3, kind: input, shape index: {}]
  %s4 = inlined_call_operand.vmem [shape: bf16[3,136,32], index: 4, kind: input, shape index: {}]
  %s5 = inlined_call_operand.hbm [shape: f32[3,8,128], index: 5, kind: output, shape index: {}]
  %s6 = sld [smem:[#allocation0]]
  $region30: #{tpu_custom_call.1} parent=0
    _
  %s8 = ssub.s32 1, %s6
  %s9 = scalar_select 0, %s8, %s6
  $region1: #{tpu_custom_call.1} parent=0
    #allocation2 [shape = 'u8[12288]{0}', space=vmem, size = 0x3000, scoped, tag = 'output window, operand 0, single buffered']
    #allocation3 [shape = 's32[1]{0}', space=sflag, size = 0x4, scoped, tag = 'scoped memory for tpu_custom_call.1']
    %10 = vsyncpa [#allocation3], 0
    // Predicated region
    $region2: #{tpu_custom_call.1} parent=1 // pred_check
      _
    $region3: #{tpu_custom_call.1} parent=1 // pred_check_branch
      %12 = sbr.rel (0) target = $region5
    $region4: #{tpu_custom_call.1} parent=1 // pred_region
      _
    $region5: #{tpu_custom_call.1} parent=1 // pred_fallthru
      _
    // Predicated region
    $region6: #{tpu_custom_call.1} parent=1 // pred_check
      _
    $region7: #{tpu_custom_call.1} parent=1 // pred_check_branch
      %14 = sbr.rel (0) target = $region9
    $region8: #{tpu_custom_call.1} parent=1 // pred_region
      _
    $region9: #{tpu_custom_call.1} parent=1 // pred_fallthru
      _
    // Predicated region
    $region10: #{tpu_custom_call.1} parent=1 // pred_check
      _
    $region11: #{tpu_custom_call.1} parent=1 // pred_check_branch
      %16 = sbr.rel (0) target = $region13
    $region12: #{tpu_custom_call.1} parent=1 // pred_region
      _
    $region13: #{tpu_custom_call.1} parent=1 // pred_fallthru
      _
    // Predicated region
    $region14: #{tpu_custom_call.1} parent=1 // pred_check
      _
    $region15: #{tpu_custom_call.1} parent=1 // pred_check_branch
      %18 = sbr.rel (0) target = $region17
    $region16: #{tpu_custom_call.1} parent=1 // pred_region
      _
    $region17: #{tpu_custom_call.1} parent=1 // pred_fallthru
      _
    // Predicated region
    $region18: #{tpu_custom_call.1} parent=1 // pred_check
      _
    $region19: #{tpu_custom_call.1} parent=1 // pred_check_branch
      %20 = sbr.rel (0) target = $region21
    $region20: #{tpu_custom_call.1} parent=1 // pred_region
      _
    $region21: #{tpu_custom_call.1} parent=1 // pred_fallthru
      _
    %v22 = vld [vmem:[%s1] sm:$0xff]
    %v23 = vld [vmem:[%s1 + $0x8] sm:$0xff]
    %v24 = vld [vmem:[%s1 + $0x10] sm:$0xff]
    %v25 = vld [vmem:[%s1 + $0x18] sm:$0xff]
    %v26 = vld [vmem:[%s2] sm:$0xff]
    %v27 = vld [vmem:[%s2 + $0x8] sm:$0xff]
    %v28 = vld [vmem:[%s2 + $0x10] sm:$0xff]
    %v29 = vld [vmem:[%s2 + $0x18] sm:$0xff]
    %v30 = vld [vmem:[%s2 + $0x20] sm:$0xff]
    %v31 = vld [vmem:[%s2 + $0x28] sm:$0xff]
    %v32 = vld [vmem:[%s2 + $0x30] sm:$0xff]
    %v33 = vld [vmem:[%s2 + $0x38] sm:$0xff]
    %v34 = vld [vmem:[%s2 + $0x40] sm:$0xff]
    %v35 = vld [vmem:[%s2 + $0x48] sm:$0xff]
    %v36 = vld [vmem:[%s2 + $0x50] sm:$0xff]
    %v37 = vld [vmem:[%s2 + $0x58] sm:$0xff]
    %v38 = vld [vmem:[%s2 + $0x60] sm:$0xff]
    %v39 = vld [vmem:[%s2 + $0x68] sm:$0xff]
    %v40 = vld [vmem:[%s2 + $0x70] sm:$0xff]
    %v41 = vld [vmem:[%s2 + $0x78] sm:$0xff]
    %v42 = vld [vmem:[%s2 + $0x80] sm:$0xff]
    %v43 = vld [vmem:[%s3] sm:$0xff]
    %v44 = vld [vmem:[%s0 + $0x1] sm:$0x1]
    %v45 = vld [vmem:[%s0 + $0x2] sm:$0x1]
    %v46 = vadd.f32 %v44, 1.0
    %v47 = vmul.f32 %v46, 8.0
    %v48 = vand.u32 2147483647, %v47
    %v49 = vrcp.pop 16.0
    %v50 = vmul.f32 %v48, %v49
    %v51 = vfloor.f32 %v50
    %v52 = vmul.f32 %v51, 16.0
    %v53 = vsub.f32 %v48, %v52
    %v54 = vmul.f32 %v51, 0.5
    %v55 = vfloor.f32 %v54
    %v56 = vmul.f32 %v55, 2.0
    %v57 = vsub.f32 %v51, %v56
    %vm58 = vcmp.lt.f32.partialorder %v57, 0.5
    %v59 = vsub.f32 16.0, %v53
    %v60 = vsel %vm58, %v53, %v59
    %v61 = vmax.f32 %v60, 0.0
    %v62 = vmin.f32 %v61, 16.0
    %v63 = vadd.f32 %v45, 1.0
    %v64 = vmul.f32 %v63, 8.0
    %v65 = vand.u32 2147483647, %v64
    %v66 = vmul.f32 %v65, %v49
    %v67 = vfloor.f32 %v66
    %v68 = vmul.f32 %v67, 16.0
    %v69 = vsub.f32 %v65, %v68
    %v70 = vmul.f32 %v67, 0.5
    %v71 = vfloor.f32 %v70
    %v72 = vmul.f32 %v71, 2.0
    %v73 = vsub.f32 %v67, %v72
    %vm74 = vcmp.lt.f32.partialorder %v73, 0.5
    %v75 = vsub.f32 16.0, %v69
    %v76 = vsel %vm74, %v69, %v75
    %v77 = vmax.f32 %v76, 0.0
    %v78 = vmin.f32 %v77, 16.0
    %80 = vset.pattern.permute.xlu0 0
    %81 = vperm.xlu0 %80, %v22
    %v82 = vpop.permute.xlu0 %81
    %85 = vset.pattern.permute.xlu0 0
    %86 = vperm.xlu0 %85, %v23
    %v87 = vpop.permute.xlu0 %86
    %90 = vset.pattern.permute.xlu0 0
    %91 = vperm.xlu0 %90, %v24
    %v92 = vpop.permute.xlu0 %91
    %95 = vset.pattern.permute.xlu0 0
    %96 = vperm.xlu0 %95, %v25
    %v97 = vpop.permute.xlu0 %96
    %v99 = vlaneseq
    %v100 = vshrl.u32 %v99, 7
    %v101 = vsub.s32 0, %v100
    %v102 = vrot.slane %v62, %v101
    %v103 = vsub.f32 %v82, %v102
    %v104 = vsub.f32 %v87, %v102
    %v105 = vsub.f32 %v92, %v102
    %v106 = vsub.f32 %v97, %v102
    %v107 = vand.u32 2147483647, %v103
    %v108 = vand.u32 2147483647, %v104
    %v109 = vand.u32 2147483647, %v105
    %v110 = vand.u32 2147483647, %v106
    %v111 = vsub.f32 1.0, %v107
    %v112 = vsub.f32 1.0, %v108
    %v113 = vsub.f32 1.0, %v109
    %v114 = vsub.f32 1.0, %v110
    %v115 = vmax.f32 %v111, 0.0
    %v116 = vmax.f32 %v112, 0.0
    %v117 = vmax.f32 %v113, 0.0
    %v118 = vmax.f32 %v114, 0.0
    %120 = vset.pattern.permute.xlu0 0
    %121 = vperm.xlu0 %120, %v26
    %v122 = vpop.permute.xlu0 %121
    %125 = vset.pattern.permute.xlu0 0
    %126 = vperm.xlu0 %125, %v27
    %v127 = vpop.permute.xlu0 %126
    %130 = vset.pattern.permute.xlu0 0
    %131 = vperm.xlu0 %130, %v28
    %v132 = vpop.permute.xlu0 %131
    %135 = vset.pattern.permute.xlu0 0
    %136 = vperm.xlu0 %135, %v29
    %v137 = vpop.permute.xlu0 %136
    %140 = vset.pattern.permute.xlu0 0
    %141 = vperm.xlu0 %140, %v30
    %v142 = vpop.permute.xlu0 %141
    %145 = vset.pattern.permute.xlu0 0
    %146 = vperm.xlu0 %145, %v31
    %v147 = vpop.permute.xlu0 %146
    %150 = vset.pattern.permute.xlu0 0
    %151 = vperm.xlu0 %150, %v32
    %v152 = vpop.permute.xlu0 %151
    %155 = vset.pattern.permute.xlu0 0
    %156 = vperm.xlu0 %155, %v33
    %v157 = vpop.permute.xlu0 %156
    %160 = vset.pattern.permute.xlu0 0
    %161 = vperm.xlu0 %160, %v34
    %v162 = vpop.permute.xlu0 %161
    %165 = vset.pattern.permute.xlu0 0
    %166 = vperm.xlu0 %165, %v35
    %v167 = vpop.permute.xlu0 %166
    %170 = vset.pattern.permute.xlu0 0
    %171 = vperm.xlu0 %170, %v36
    %v172 = vpop.permute.xlu0 %171
    %175 = vset.pattern.permute.xlu0 0
    %176 = vperm.xlu0 %175, %v37
    %v177 = vpop.permute.xlu0 %176
    %180 = vset.pattern.permute.xlu0 0
    %181 = vperm.xlu0 %180, %v38
    %v182 = vpop.permute.xlu0 %181
    %185 = vset.pattern.permute.xlu0 0
    %186 = vperm.xlu0 %185, %v39
    %v187 = vpop.permute.xlu0 %186
    %190 = vset.pattern.permute.xlu0 0
    %191 = vperm.xlu0 %190, %v40
    %v192 = vpop.permute.xlu0 %191
    %195 = vset.pattern.permute.xlu0 0
    %196 = vperm.xlu0 %195, %v41
    %v197 = vpop.permute.xlu0 %196
    %200 = vset.pattern.permute.xlu0 0
    %201 = vperm.xlu0 %200, %v42
    %v202 = vpop.permute.xlu0 %201
    %v204 = vlaneseq
    %v205 = vshrl.u32 %v204, 7
    %v206 = vsub.s32 0, %v205
    %v207 = vrot.slane %v78, %v206
    %v208 = vsub.f32 %v122, %v207
    %v209 = vsub.f32 %v127, %v207
    %v210 = vsub.f32 %v132, %v207
    %v211 = vsub.f32 %v137, %v207
    %v212 = vsub.f32 %v142, %v207
    %v213 = vsub.f32 %v147, %v207
    %v214 = vsub.f32 %v152, %v207
    %v215 = vsub.f32 %v157, %v207
    %v216 = vsub.f32 %v162, %v207
    %v217 = vsub.f32 %v167, %v207
    %v218 = vsub.f32 %v172, %v207
    %v219 = vsub.f32 %v177, %v207
    %v220 = vsub.f32 %v182, %v207
    %v221 = vsub.f32 %v187, %v207
    %v222 = vsub.f32 %v192, %v207
    %v223 = vsub.f32 %v197, %v207
    %v224 = vsub.f32 %v202, %v207
    %v225 = vand.u32 2147483647, %v208
    %v226 = vand.u32 2147483647, %v209
    %v227 = vand.u32 2147483647, %v210
    %v228 = vand.u32 2147483647, %v211
    %v229 = vand.u32 2147483647, %v212
    %v230 = vand.u32 2147483647, %v213
    %v231 = vand.u32 2147483647, %v214
    %v232 = vand.u32 2147483647, %v215
    %v233 = vand.u32 2147483647, %v216
    %v234 = vand.u32 2147483647, %v217
    %v235 = vand.u32 2147483647, %v218
    %v236 = vand.u32 2147483647, %v219
    %v237 = vand.u32 2147483647, %v220
    %v238 = vand.u32 2147483647, %v221
    %v239 = vand.u32 2147483647, %v222
    %v240 = vand.u32 2147483647, %v223
    %v241 = vand.u32 2147483647, %v224
    %v242 = vsub.f32 1.0, %v225
    %v243 = vsub.f32 1.0, %v226
    %v244 = vsub.f32 1.0, %v227
    %v245 = vsub.f32 1.0, %v228
    %v246 = vsub.f32 1.0, %v229
    %v247 = vsub.f32 1.0, %v230
    %v248 = vsub.f32 1.0, %v231
    %v249 = vsub.f32 1.0, %v232
    %v250 = vsub.f32 1.0, %v233
    %v251 = vsub.f32 1.0, %v234
    %v252 = vsub.f32 1.0, %v235
    %v253 = vsub.f32 1.0, %v236
    %v254 = vsub.f32 1.0, %v237
    %v255 = vsub.f32 1.0, %v238
    %v256 = vsub.f32 1.0, %v239
    %v257 = vsub.f32 1.0, %v240
    %v258 = vsub.f32 1.0, %v241
    %v259 = vmax.f32 %v242, 0.0
    %v260 = vmax.f32 %v243, 0.0
    %v261 = vmax.f32 %v244, 0.0
    %v262 = vmax.f32 %v245, 0.0
    %v263 = vmax.f32 %v246, 0.0
    %v264 = vmax.f32 %v247, 0.0
    %v265 = vmax.f32 %v248, 0.0
    %v266 = vmax.f32 %v249, 0.0
    %v267 = vmax.f32 %v250, 0.0
    %v268 = vmax.f32 %v251, 0.0
    %v269 = vmax.f32 %v252, 0.0
    %v270 = vmax.f32 %v253, 0.0
    %v271 = vmax.f32 %v254, 0.0
    %v272 = vmax.f32 %v255, 0.0
    %v273 = vmax.f32 %v256, 0.0
    %v274 = vmax.f32 %v257, 0.0
    %v275 = vmax.f32 %v258, 0.0
    %v276 = vld [vmem:[%s4] sm:$0xf]
    %v277 = vld [vmem:[%s4 + $0x4] sm:$0xf]
    %v278 = vld [vmem:[%s4 + $0x8] sm:$0xf]
    %v279 = vld [vmem:[%s4 + $0xc] sm:$0xf]
    %v280 = vld [vmem:[%s4 + $0x10] sm:$0xf]
    %v281 = vld [vmem:[%s4 + $0x14] sm:$0xf]
    %v282 = vld [vmem:[%s4 + $0x18] sm:$0xf]
    %v283 = vld [vmem:[%s4 + $0x1c] sm:$0xf]
    %v284 = vld [vmem:[%s4 + $0x20] sm:$0xf]
    %v285 = vld [vmem:[%s4 + $0x24] sm:$0xf]
    %v286 = vld [vmem:[%s4 + $0x28] sm:$0xf]
    %v287 = vld [vmem:[%s4 + $0x2c] sm:$0xf]
    %v288 = vld [vmem:[%s4 + $0x30] sm:$0xf]
    %v289 = vld [vmem:[%s4 + $0x34] sm:$0xf]
    %v290 = vld [vmem:[%s4 + $0x38] sm:$0xf]
    %v291 = vld [vmem:[%s4 + $0x3c] sm:$0xf]
    %v292 = vld [vmem:[%s4 + $0x40] sm:$0xf]
    %v293 = vpack.c.bf16 %v116, %v115
    %v294 = vpack.c.bf16 %v118, %v117
    %v312 = vunpack.c.l.b16 %v276
    %v313 = vunpack.c.l.b16 %v277
    %v314 = vunpack.c.l.b16 %v278
    %v315 = vunpack.c.l.b16 %v279
    %v316 = vunpack.c.l.b16 %v280
    %v317 = vunpack.c.l.b16 %v281
    %v318 = vunpack.c.l.b16 %v282
    %v319 = vunpack.c.l.b16 %v283
    %v320 = vunpack.c.l.b16 %v284
    %v321 = vunpack.c.l.b16 %v285
    %v322 = vunpack.c.l.b16 %v286
    %v323 = vunpack.c.l.b16 %v287
    %v324 = vunpack.c.l.b16 %v288
    %v325 = vunpack.c.l.b16 %v289
    %v326 = vunpack.c.l.b16 %v290
    %v327 = vunpack.c.l.b16 %v291
    %v328 = vunpack.c.l.b16 %v292
    %v329 = vpack.c.b16 %v313, %v312
    %v330 = vpack.c.b16 %v315, %v314
    %v331 = vpack.c.b16 %v317, %v316
    %v332 = vpack.c.b16 %v319, %v318
    %v333 = vpack.c.b16 %v321, %v320
    %v334 = vpack.c.b16 %v323, %v322
    %v335 = vpack.c.b16 %v325, %v324
    %v336 = vpack.c.b16 %v327, %v326
    %v337 = vpack.c.b16 %v328, %v328
    %vm338 = vcmask 261120
    %v340 = vsel %vm338, %v329, 0
    %v343 = vsel %vm338, %v330, 0
    %v346 = vsel %vm338, %v331, 0
    %v349 = vsel %vm338, %v332, 0
    %v352 = vsel %vm338, %v333, 0
    %v355 = vsel %vm338, %v334, 0
    %v358 = vsel %vm338, %v335, 0
    %v361 = vsel %vm338, %v336, 0
    %v364 = vsel %vm338, %v337, 0
    %366 = vmatprep.subr.bf16.mxu0 0
    %367 = vmatpush1.bf16.msra.mxu0 %v293
    %368 = vmatprep.subr.bf16.mxu0 0
    %369 = vmatpush1.bf16.msra.mxu0 %v294
    %370 = vmatprep.subr.bf16.mxu0 0
    %371 = vmatpush1.bf16.msra.mxu0 0
    %372 = vmatprep.subr.bf16.mxu0 0
    %373 = vmatpush1.bf16.msra.mxu0 0
    %374 = vmatprep.subr.bf16.mxu0 0
    %375 = vmatpush1.bf16.msra.mxu0 0
    %376 = vmatprep.subr.bf16.mxu0 0
    %377 = vmatpush1.bf16.msra.mxu0 0
    %378 = vmatprep.subr.bf16.mxu0 0
    %379 = vmatpush1.bf16.msra.mxu0 0
    %380 = vmatprep.subr.bf16.mxu0 0
    %381 = vmatpush1.bf16.msra.mxu0 0
    %382 = vmatprep.subr.bf16.mxu0 0
    %383 = vmatpush1.bf16.msra.mxu0 0
    %384 = vmatprep.subr.bf16.mxu0 0
    %385 = vmatpush1.bf16.msra.mxu0 0
    %386 = vmatprep.subr.bf16.mxu0 0
    %387 = vmatpush1.bf16.msra.mxu0 0
    %388 = vmatprep.subr.bf16.mxu0 0
    %389 = vmatpush1.bf16.msra.mxu0 0
    %390 = vmatprep.subr.bf16.mxu0 0
    %391 = vmatpush1.bf16.msra.mxu0 0
    %392 = vmatprep.subr.bf16.mxu0 0
    %393 = vmatpush1.bf16.msra.mxu0 0
    %394 = vmatprep.subr.bf16.mxu0 0
    %395 = vmatpush1.bf16.msra.mxu0 0
    %396 = vmatprep.subr.bf16.mxu0 0
    %397 = vmatpush1.bf16.msra.mxu0 0
    %398 = vmatprep.mubr.bf16.mxu0 0
    %399 = vmatmul.mubr.bf16.gmra.mrb[0].mxu0 %v340
    %v400 = vpop.f32.mrb[0].mxu0
    %v401 = vadd.f32 0.0, %v400
    %v402 = vpop.f32.mrb[0].mxu0
    %v403 = vpop.f32.mrb[0].mxu0
    %v404 = vadd.f32 0.0, %v403
    %v405 = vpop.f32.mrb[0].mxu0
    %406 = vmatprep.mubr.bf16.mxu0 0
    %407 = vmatmul.mubr.bf16.gmra.mrb[0].mxu0 %v343
    %v408 = vpop.f32.mrb[0].mxu0
    %v409 = vadd.f32 0.0, %v408
    %v410 = vpop.f32.mrb[0].mxu0
    %v411 = vpop.f32.mrb[0].mxu0
    %v412 = vadd.f32 0.0, %v411
    %v413 = vpop.f32.mrb[0].mxu0
    %414 = vmatprep.mubr.bf16.mxu0 0
    %415 = vmatmul.mubr.bf16.gmra.mrb[0].mxu0 %v346
    %v416 = vpop.f32.mrb[0].mxu0
    %v417 = vadd.f32 0.0, %v416
    %v418 = vpop.f32.mrb[0].mxu0
    %v419 = vpop.f32.mrb[0].mxu0
    %v420 = vadd.f32 0.0, %v419
    %v421 = vpop.f32.mrb[0].mxu0
    %422 = vmatprep.mubr.bf16.mxu0 0
    %423 = vmatmul.mubr.bf16.gmra.mrb[0].mxu0 %v349
    %v424 = vpop.f32.mrb[0].mxu0
    %v425 = vadd.f32 0.0, %v424
    %v426 = vpop.f32.mrb[0].mxu0
    %v427 = vpop.f32.mrb[0].mxu0
    %v428 = vadd.f32 0.0, %v427
    %v429 = vpop.f32.mrb[0].mxu0
    %430 = vmatprep.mubr.bf16.mxu0 0
    %431 = vmatmul.mubr.bf16.gmra.mrb[0].mxu0 %v352
    %v432 = vpop.f32.mrb[0].mxu0
    %v433 = vadd.f32 0.0, %v432
    %v434 = vpop.f32.mrb[0].mxu0
    %v435 = vpop.f32.mrb[0].mxu0
    %v436 = vadd.f32 0.0, %v435
    %v437 = vpop.f32.mrb[0].mxu0
    %438 = vmatprep.mubr.bf16.mxu0 0
    %439 = vmatmul.mubr.bf16.gmra.mrb[0].mxu0 %v355
    %v440 = vpop.f32.mrb[0].mxu0
    %v441 = vadd.f32 0.0, %v440
    %v442 = vpop.f32.mrb[0].mxu0
    %v443 = vpop.f32.mrb[0].mxu0
    %v444 = vadd.f32 0.0, %v443
    %v445 = vpop.f32.mrb[0].mxu0
    %446 = vmatprep.mubr.bf16.mxu0 0
    %447 = vmatmul.mubr.bf16.gmra.mrb[0].mxu0 %v358
    %v448 = vpop.f32.mrb[0].mxu0
    %v449 = vadd.f32 0.0, %v448
    %v450 = vpop.f32.mrb[0].mxu0
    %v451 = vpop.f32.mrb[0].mxu0
    %v452 = vadd.f32 0.0, %v451
    %v453 = vpop.f32.mrb[0].mxu0
    %454 = vmatprep.mubr.bf16.mxu0 0
    %455 = vmatmul.mubr.bf16.gmra.mrb[0].mxu0 %v361
    %v456 = vpop.f32.mrb[0].mxu0
    %v457 = vadd.f32 0.0, %v456
    %v458 = vpop.f32.mrb[0].mxu0
    %v459 = vpop.f32.mrb[0].mxu0
    %v460 = vadd.f32 0.0, %v459
    %v461 = vpop.f32.mrb[0].mxu0
    %462 = vmatprep.mubr.bf16.mxu0 0
    %463 = vmatmul.mubr.bf16.gmra.mrb[0].mxu0 %v364
    %v464 = vpop.f32.mrb[0].mxu0
    %v465 = vadd.f32 0.0, %v464
    %v466 = vpop.f32.mrb[0].mxu0
    %v467 = vpop.f32.mrb[0].mxu0
    %v468 = vpop.f32.mrb[0].mxu0
    %469 = vdwg.mxu0
    %v470 = vmul.f32 %v401, %v259
    %v471 = vmul.f32 %v404, %v260
    %v472 = vmul.f32 %v409, %v261
    %v473 = vmul.f32 %v412, %v262
    %v474 = vmul.f32 %v417, %v263
    %v475 = vmul.f32 %v420, %v264
    %v476 = vmul.f32 %v425, %v265
    %v477 = vmul.f32 %v428, %v266
    %v478 = vmul.f32 %v433, %v267
    %v479 = vmul.f32 %v436, %v268
    %v480 = vmul.f32 %v441, %v269
    %v481 = vmul.f32 %v444, %v270
    %v482 = vmul.f32 %v449, %v271
    %v483 = vmul.f32 %v452, %v272
    %v484 = vmul.f32 %v457, %v273
    %v485 = vmul.f32 %v460, %v274
    %v486 = vmul.f32 %v465, %v275
    %v487 = vpack.c.bf16 %v471, %v470
    %v488 = vpack.c.bf16 %v473, %v472
    %v489 = vpack.c.bf16 %v475, %v474
    %v490 = vpack.c.bf16 %v477, %v476
    %v491 = vpack.c.bf16 %v479, %v478
    %v492 = vpack.c.bf16 %v481, %v480
    %v493 = vpack.c.bf16 %v483, %v482
    %v494 = vpack.c.bf16 %v485, %v484
    %v495 = vpack.c.bf16 %v486, %v486
    %v497 = vunpack.c.l.b16 %v43
    %v498 = vunpack.c.h.b16 %v43
    %v499 = vpack.c.b16 %v497, %v497
    %v500 = vpack.c.b16 %v498, %v498
    %vm502 = vcmask 64512
    %v504 = vsel %vm502, %v500, 0
    %vm506 = vcmask 1043456
    %v508 = vsel %vm506, %v495, 0
    %510 = vmatprep.subr.bf16.mxu0 0
    %511 = vmatpush1.bf16.msra.mxu0 %v487
    %512 = vmatprep.subr.bf16.mxu0 0
    %513 = vmatpush1.bf16.msra.mxu0 %v488
    %514 = vmatprep.subr.bf16.mxu0 0
    %515 = vmatpush1.bf16.msra.mxu0 %v489
    %516 = vmatprep.subr.bf16.mxu0 0
    %517 = vmatpush1.bf16.msra.mxu0 %v490
    %518 = vmatprep.subr.bf16.mxu0 0
    %519 = vmatpush1.bf16.msra.mxu0 %v491
    %520 = vmatprep.subr.bf16.mxu0 0
    %521 = vmatpush1.bf16.msra.mxu0 %v492
    %522 = vmatprep.subr.bf16.mxu0 0
    %523 = vmatpush1.bf16.msra.mxu0 %v493
    %524 = vmatprep.subr.bf16.mxu0 0
    %525 = vmatpush1.bf16.msra.mxu0 %v494
    %526 = vmatprep.subr.bf16.mxu0 0
    %527 = vmatpush1.bf16.msra.mxu0 %v508
    %528 = vmatprep.subr.bf16.mxu0 0
    %529 = vmatpush1.bf16.msra.mxu0 0
    %530 = vmatprep.subr.bf16.mxu0 0
    %531 = vmatpush1.bf16.msra.mxu0 0
    %532 = vmatprep.subr.bf16.mxu0 0
    %533 = vmatpush1.bf16.msra.mxu0 0
    %534 = vmatprep.subr.bf16.mxu0 0
    %535 = vmatpush1.bf16.msra.mxu0 0
    %536 = vmatprep.subr.bf16.mxu0 0
    %537 = vmatpush1.bf16.msra.mxu0 0
    %538 = vmatprep.subr.bf16.mxu0 0
    %539 = vmatpush1.bf16.msra.mxu0 0
    %540 = vmatprep.subr.bf16.mxu0 0
    %541 = vmatpush1.bf16.msra.mxu0 0
    %542 = vmatprep.mubr.bf16.mxu0 %v504
    %543 = vmatmul.mubr.bf16.gmra.mrb[0].mxu0 %v499
    %v544 = vpop.f32.mrb[0].mxu0
    %v545 = vadd.f32 0.0, %v544
    %v546 = vpop.f32.mrb[0].mxu0
    %v547 = vpop.f32.mrb[0].mxu0
    %v548 = vpop.f32.mrb[0].mxu0
    %549 = vdwg.mxu0
    %550 = vst [vmem:[#allocation2] sm:$0xff] %v545
    %v551 = vld [vmem:[%s0] sm:$0x1]
    %v552 = vld [vmem:[%s0 + $0x2] sm:$0x1]
    %v553 = vadd.f32 %v551, 1.0
    %v554 = vmul.f32 %v553, 8.0
    %v555 = vand.u32 2147483647, %v554
    %v556 = vmul.f32 %v555, %v49
    %v557 = vfloor.f32 %v556
    %v558 = vmul.f32 %v557, 16.0
    %v559 = vsub.f32 %v555, %v558
    %v560 = vmul.f32 %v557, 0.5
    %v561 = vfloor.f32 %v560
    %v562 = vmul.f32 %v561, 2.0
    %v563 = vsub.f32 %v557, %v562
    %vm564 = vcmp.lt.f32.partialorder %v563, 0.5
    %v565 = vsub.f32 16.0, %v559
    %v566 = vsel %vm564, %v559, %v565
    %v567 = vmax.f32 %v566, 0.0
    %v568 = vmin.f32 %v567, 16.0
    %v569 = vadd.f32 %v552, 1.0
    %v570 = vmul.f32 %v569, 8.0
    %v571 = vand.u32 2147483647, %v570
    %v572 = vmul.f32 %v571, %v49
    %v573 = vfloor.f32 %v572
    %v574 = vmul.f32 %v573, 16.0
    %v575 = vsub.f32 %v571, %v574
    %v576 = vmul.f32 %v573, 0.5
    %v577 = vfloor.f32 %v576
    %v578 = vmul.f32 %v577, 2.0
    %v579 = vsub.f32 %v573, %v578
    %vm580 = vcmp.lt.f32.partialorder %v579, 0.5
    %v581 = vsub.f32 16.0, %v575
    %v582 = vsel %vm580, %v575, %v581
    %v583 = vmax.f32 %v582, 0.0
    %v584 = vmin.f32 %v583, 16.0
    %v585 = vlaneseq
    %v586 = vshrl.u32 %v585, 7
    %v587 = vsub.s32 0, %v586
    %v588 = vrot.slane %v568, %v587
    %v589 = vsub.f32 %v82, %v588
    %v590 = vsub.f32 %v87, %v588
    %v591 = vsub.f32 %v92, %v588
    %v592 = vsub.f32 %v97, %v588
    %v593 = vand.u32 2147483647, %v589
    %v594 = vand.u32 2147483647, %v590
    %v595 = vand.u32 2147483647, %v591
    %v596 = vand.u32 2147483647, %v592
    %v597 = vsub.f32 1.0, %v593
    %v598 = vsub.f32 1.0, %v594
    %v599 = vsub.f32 1.0, %v595
    %v600 = vsub.f32 1.0, %v596
    %v601 = vmax.f32 %v597, 0.0
    %v602 = vmax.f32 %v598, 0.0
    %v603 = vmax.f32 %v599, 0.0
    %v604 = vmax.f32 %v600, 0.0
    %v605 = vlaneseq
    %v606 = vshrl.u32 %v605, 7
    %v607 = vsub.s32 0, %v606
    %v608 = vrot.slane %v584, %v607
    %v609 = vsub.f32 %v122, %v608
    %v610 = vsub.f32 %v127, %v608
    %v611 = vsub.f32 %v132, %v608
    %v612 = vsub.f32 %v137, %v608
    %v613 = vsub.f32 %v142, %v608
    %v614 = vsub.f32 %v147, %v608
    %v615 = vsub.f32 %v152, %v608
    %v616 = vsub.f32 %v157, %v608
    %v617 = vsub.f32 %v162, %v608
    %v618 = vsub.f32 %v167, %v608
    %v619 = vsub.f32 %v172, %v608
    %v620 = vsub.f32 %v177, %v608
    %v621 = vsub.f32 %v182, %v608
    %v622 = vsub.f32 %v187, %v608
    %v623 = vsub.f32 %v192, %v608
    %v624 = vsub.f32 %v197, %v608
    %v625 = vsub.f32 %v202, %v608
    %v626 = vand.u32 2147483647, %v609
    %v627 = vand.u32 2147483647, %v610
    %v628 = vand.u32 2147483647, %v611
    %v629 = vand.u32 2147483647, %v612
    %v630 = vand.u32 2147483647, %v613
    %v631 = vand.u32 2147483647, %v614
    %v632 = vand.u32 2147483647, %v615
    %v633 = vand.u32 2147483647, %v616
    %v634 = vand.u32 2147483647, %v617
    %v635 = vand.u32 2147483647, %v618
    %v636 = vand.u32 2147483647, %v619
    %v637 = vand.u32 2147483647, %v620
    %v638 = vand.u32 2147483647, %v621
    %v639 = vand.u32 2147483647, %v622
    %v640 = vand.u32 2147483647, %v623
    %v641 = vand.u32 2147483647, %v624
    %v642 = vand.u32 2147483647, %v625
    %v643 = vsub.f32 1.0, %v626
    %v644 = vsub.f32 1.0, %v627
    %v645 = vsub.f32 1.0, %v628
    %v646 = vsub.f32 1.0, %v629
    %v647 = vsub.f32 1.0, %v630
    %v648 = vsub.f32 1.0, %v631
    %v649 = vsub.f32 1.0, %v632
    %v650 = vsub.f32 1.0, %v633
    %v651 = vsub.f32 1.0, %v634
    %v652 = vsub.f32 1.0, %v635
    %v653 = vsub.f32 1.0, %v636
    %v654 = vsub.f32 1.0, %v637
    %v655 = vsub.f32 1.0, %v638
    %v656 = vsub.f32 1.0, %v639
    %v657 = vsub.f32 1.0, %v640
    %v658 = vsub.f32 1.0, %v641
    %v659 = vsub.f32 1.0, %v642
    %v660 = vmax.f32 %v643, 0.0
    %v661 = vmax.f32 %v644, 0.0
    %v662 = vmax.f32 %v645, 0.0
    %v663 = vmax.f32 %v646, 0.0
    %v664 = vmax.f32 %v647, 0.0
    %v665 = vmax.f32 %v648, 0.0
    %v666 = vmax.f32 %v649, 0.0
    %v667 = vmax.f32 %v650, 0.0
    %v668 = vmax.f32 %v651, 0.0
    %v669 = vmax.f32 %v652, 0.0
    %v670 = vmax.f32 %v653, 0.0
    %v671 = vmax.f32 %v654, 0.0
    %v672 = vmax.f32 %v655, 0.0
    %v673 = vmax.f32 %v656, 0.0
    %v674 = vmax.f32 %v657, 0.0
    %v675 = vmax.f32 %v658, 0.0
    %v676 = vmax.f32 %v659, 0.0
    %s677 = scalar_lea.vmem %s4, 68
    %v678 = vld [vmem:[%s677] sm:$0xf]
    %v679 = vld [vmem:[%s677 + $0x4] sm:$0xf]
    %v680 = vld [vmem:[%s677 + $0x8] sm:$0xf]
    %v681 = vld [vmem:[%s677 + $0xc] sm:$0xf]
    %v682 = vld [vmem:[%s677 + $0x10] sm:$0xf]
    %v683 = vld [vmem:[%s677 + $0x14] sm:$0xf]
    %v684 = vld [vmem:[%s677 + $0x18] sm:$0xf]
    %v685 = vld [vmem:[%s677 + $0x1c] sm:$0xf]
    %v686 = vld [vmem:[%s677 + $0x20] sm:$0xf]
    %v687 = vld [vmem:[%s677 + $0x24] sm:$0xf]
    %v688 = vld [vmem:[%s677 + $0x28] sm:$0xf]
    %v689 = vld [vmem:[%s677 + $0x2c] sm:$0xf]
    %v690 = vld [vmem:[%s677 + $0x30] sm:$0xf]
    %v691 = vld [vmem:[%s677 + $0x34] sm:$0xf]
    %v692 = vld [vmem:[%s677 + $0x38] sm:$0xf]
    %v693 = vld [vmem:[%s677 + $0x3c] sm:$0xf]
    %v694 = vld [vmem:[%s677 + $0x40] sm:$0xf]
    %v695 = vpack.c.bf16 %v602, %v601
    %v696 = vpack.c.bf16 %v604, %v603
    %v714 = vunpack.c.l.b16 %v678
    %v715 = vunpack.c.l.b16 %v679
    %v716 = vunpack.c.l.b16 %v680
    %v717 = vunpack.c.l.b16 %v681
    %v718 = vunpack.c.l.b16 %v682
    %v719 = vunpack.c.l.b16 %v683
    %v720 = vunpack.c.l.b16 %v684
    %v721 = vunpack.c.l.b16 %v685
    %v722 = vunpack.c.l.b16 %v686
    %v723 = vunpack.c.l.b16 %v687
    %v724 = vunpack.c.l.b16 %v688
    %v725 = vunpack.c.l.b16 %v689
    %v726 = vunpack.c.l.b16 %v690
    %v727 = vunpack.c.l.b16 %v691
    %v728 = vunpack.c.l.b16 %v692
    %v729 = vunpack.c.l.b16 %v693
    %v730 = vunpack.c.l.b16 %v694
    %v731 = vpack.c.b16 %v715, %v714
    %v732 = vpack.c.b16 %v717, %v716
    %v733 = vpack.c.b16 %v719, %v718
    %v734 = vpack.c.b16 %v721, %v720
    %v735 = vpack.c.b16 %v723, %v722
    %v736 = vpack.c.b16 %v725, %v724
    %v737 = vpack.c.b16 %v727, %v726
    %v738 = vpack.c.b16 %v729, %v728
    %v739 = vpack.c.b16 %v730, %v730
    %v741 = vsel %vm338, %v731, 0
    %v744 = vsel %vm338, %v732, 0
    %v747 = vsel %vm338, %v733, 0
    %v750 = vsel %vm338, %v734, 0
    %v753 = vsel %vm338, %v735, 0
    %v756 = vsel %vm338, %v736, 0
    %v759 = vsel %vm338, %v737, 0
    %v762 = vsel %vm338, %v738, 0
    %v765 = vsel %vm338, %v739, 0
    %767 = vmatprep.subr.bf16.mxu0 0
    %768 = vmatpush1.bf16.msra.mxu0 %v695
    %769 = vmatprep.subr.bf16.mxu0 0
    %770 = vmatpush1.bf16.msra.mxu0 %v696
    %771 = vmatprep.subr.bf16.mxu0 0
    %772 = vmatpush1.bf16.msra.mxu0 0
    %773 = vmatprep.subr.bf16.mxu0 0
    %774 = vmatpush1.bf16.msra.mxu0 0
    %775 = vmatprep.subr.bf16.mxu0 0
    %776 = vmatpush1.bf16.msra.mxu0 0
    %777 = vmatprep.subr.bf16.mxu0 0
    %778 = vmatpush1.bf16.msra.mxu0 0
    %779 = vmatprep.subr.bf16.mxu0 0
    %780 = vmatpush1.bf16.msra.mxu0 0
    %781 = vmatprep.subr.bf16.mxu0 0
    %782 = vmatpush1.bf16.msra.mxu0 0
    %783 = vmatprep.subr.bf16.mxu0 0
    %784 = vmatpush1.bf16.msra.mxu0 0
    %785 = vmatprep.subr.bf16.mxu0 0
    %786 = vmatpush1.bf16.msra.mxu0 0
    %787 = vmatprep.subr.bf16.mxu0 0
    %788 = vmatpush1.bf16.msra.mxu0 0
    %789 = vmatprep.subr.bf16.mxu0 0
    %790 = vmatpush1.bf16.msra.mxu0 0
    %791 = vmatprep.subr.bf16.mxu0 0
    %792 = vmatpush1.bf16.msra.mxu0 0
    %793 = vmatprep.subr.bf16.mxu0 0
    %794 = vmatpush1.bf16.msra.mxu0 0
    %795 = vmatprep.subr.bf16.mxu0 0
    %796 = vmatpush1.bf16.msra.mxu0 0
    %797 = vmatprep.subr.bf16.mxu0 0
    %798 = vmatpush1.bf16.msra.mxu0 0
    %799 = vmatprep.mubr.bf16.mxu0 0
    %800 = vmatmul.mubr.bf16.gmra.mrb[0].mxu0 %v741
    %v801 = vpop.f32.mrb[0].mxu0
    %v802 = vadd.f32 0.0, %v801
    %v803 = vpop.f32.mrb[0].mxu0
    %v804 = vpop.f32.mrb[0].mxu0
    %v805 = vadd.f32 0.0, %v804
    %v806 = vpop.f32.mrb[0].mxu0
    %807 = vmatprep.mubr.bf16.mxu0 0
    %808 = vmatmul.mubr.bf16.gmra.mrb[0].mxu0 %v744
    %v809 = vpop.f32.mrb[0].mxu0
    %v810 = vadd.f32 0.0, %v809
    %v811 = vpop.f32.mrb[0].mxu0
    %v812 = vpop.f32.mrb[0].mxu0
    %v813 = vadd.f32 0.0, %v812
    %v814 = vpop.f32.mrb[0].mxu0
    %815 = vmatprep.mubr.bf16.mxu0 0
    %816 = vmatmul.mubr.bf16.gmra.mrb[0].mxu0 %v747
    %v817 = vpop.f32.mrb[0].mxu0
    %v818 = vadd.f32 0.0, %v817
    %v819 = vpop.f32.mrb[0].mxu0
    %v820 = vpop.f32.mrb[0].mxu0
    %v821 = vadd.f32 0.0, %v820
    %v822 = vpop.f32.mrb[0].mxu0
    %823 = vmatprep.mubr.bf16.mxu0 0
    %824 = vmatmul.mubr.bf16.gmra.mrb[0].mxu0 %v750
    %v825 = vpop.f32.mrb[0].mxu0
    %v826 = vadd.f32 0.0, %v825
    %v827 = vpop.f32.mrb[0].mxu0
    %v828 = vpop.f32.mrb[0].mxu0
    %v829 = vadd.f32 0.0, %v828
    %v830 = vpop.f32.mrb[0].mxu0
    %831 = vmatprep.mubr.bf16.mxu0 0
    %832 = vmatmul.mubr.bf16.gmra.mrb[0].mxu0 %v753
    %v833 = vpop.f32.mrb[0].mxu0
    %v834 = vadd.f32 0.0, %v833
    %v835 = vpop.f32.mrb[0].mxu0
    %v836 = vpop.f32.mrb[0].mxu0
    %v837 = vadd.f32 0.0, %v836
    %v838 = vpop.f32.mrb[0].mxu0
    %839 = vmatprep.mubr.bf16.mxu0 0
    %840 = vmatmul.mubr.bf16.gmra.mrb[0].mxu0 %v756
    %v841 = vpop.f32.mrb[0].mxu0
    %v842 = vadd.f32 0.0, %v841
    %v843 = vpop.f32.mrb[0].mxu0
    %v844 = vpop.f32.mrb[0].mxu0
    %v845 = vadd.f32 0.0, %v844
    %v846 = vpop.f32.mrb[0].mxu0
    %847 = vmatprep.mubr.bf16.mxu0 0
    %848 = vmatmul.mubr.bf16.gmra.mrb[0].mxu0 %v759
    %v849 = vpop.f32.mrb[0].mxu0
    %v850 = vadd.f32 0.0, %v849
    %v851 = vpop.f32.mrb[0].mxu0
    %v852 = vpop.f32.mrb[0].mxu0
    %v853 = vadd.f32 0.0, %v852
    %v854 = vpop.f32.mrb[0].mxu0
    %855 = vmatprep.mubr.bf16.mxu0 0
    %856 = vmatmul.mubr.bf16.gmra.mrb[0].mxu0 %v762
    %v857 = vpop.f32.mrb[0].mxu0
    %v858 = vadd.f32 0.0, %v857
    %v859 = vpop.f32.mrb[0].mxu0
    %v860 = vpop.f32.mrb[0].mxu0
    %v861 = vadd.f32 0.0, %v860
    %v862 = vpop.f32.mrb[0].mxu0
    %863 = vmatprep.mubr.bf16.mxu0 0
    %864 = vmatmul.mubr.bf16.gmra.mrb[0].mxu0 %v765
    %v865 = vpop.f32.mrb[0].mxu0
    %v866 = vadd.f32 0.0, %v865
    %v867 = vpop.f32.mrb[0].mxu0
    %v868 = vpop.f32.mrb[0].mxu0
    %v869 = vpop.f32.mrb[0].mxu0
    %870 = vdwg.mxu0
    %v871 = vmul.f32 %v802, %v660
    %v872 = vmul.f32 %v805, %v661
    %v873 = vmul.f32 %v810, %v662
    %v874 = vmul.f32 %v813, %v663
    %v875 = vmul.f32 %v818, %v664
    %v876 = vmul.f32 %v821, %v665
    %v877 = vmul.f32 %v826, %v666
    %v878 = vmul.f32 %v829, %v667
    %v879 = vmul.f32 %v834, %v668
    %v880 = vmul.f32 %v837, %v669
    %v881 = vmul.f32 %v842, %v670
    %v882 = vmul.f32 %v845, %v671
    %v883 = vmul.f32 %v850, %v672
    %v884 = vmul.f32 %v853, %v673
    %v885 = vmul.f32 %v858, %v674
    %v886 = vmul.f32 %v861, %v675
    %v887 = vmul.f32 %v866, %v676
    %v888 = vpack.c.bf16 %v872, %v871
    %v889 = vpack.c.bf16 %v874, %v873
    %v890 = vpack.c.bf16 %v876, %v875
    %v891 = vpack.c.bf16 %v878, %v877
    %v892 = vpack.c.bf16 %v880, %v879
    %v893 = vpack.c.bf16 %v882, %v881
    %v894 = vpack.c.bf16 %v884, %v883
    %v895 = vpack.c.bf16 %v886, %v885
    %v896 = vpack.c.bf16 %v887, %v887
    %v898 = vsel %vm506, %v896, 0
    %900 = vmatprep.subr.bf16.mxu0 0
    %901 = vmatpush1.bf16.msra.mxu0 %v888
    %902 = vmatprep.subr.bf16.mxu0 0
    %903 = vmatpush1.bf16.msra.mxu0 %v889
    %904 = vmatprep.subr.bf16.mxu0 0
    %905 = vmatpush1.bf16.msra.mxu0 %v890
    %906 = vmatprep.subr.bf16.mxu0 0
    %907 = vmatpush1.bf16.msra.mxu0 %v891
    %908 = vmatprep.subr.bf16.mxu0 0
    %909 = vmatpush1.bf16.msra.mxu0 %v892
    %910 = vmatprep.subr.bf16.mxu0 0
    %911 = vmatpush1.bf16.msra.mxu0 %v893
    %912 = vmatprep.subr.bf16.mxu0 0
    %913 = vmatpush1.bf16.msra.mxu0 %v894
    %914 = vmatprep.subr.bf16.mxu0 0
    %915 = vmatpush1.bf16.msra.mxu0 %v895
    %916 = vmatprep.subr.bf16.mxu0 0
    %917 = vmatpush1.bf16.msra.mxu0 %v898
    %918 = vmatprep.subr.bf16.mxu0 0
    %919 = vmatpush1.bf16.msra.mxu0 0
    %920 = vmatprep.subr.bf16.mxu0 0
    %921 = vmatpush1.bf16.msra.mxu0 0
    %922 = vmatprep.subr.bf16.mxu0 0
    %923 = vmatpush1.bf16.msra.mxu0 0
    %924 = vmatprep.subr.bf16.mxu0 0
    %925 = vmatpush1.bf16.msra.mxu0 0
    %926 = vmatprep.subr.bf16.mxu0 0
    %927 = vmatpush1.bf16.msra.mxu0 0
    %928 = vmatprep.subr.bf16.mxu0 0
    %929 = vmatpush1.bf16.msra.mxu0 0
    %930 = vmatprep.subr.bf16.mxu0 0
    %931 = vmatpush1.bf16.msra.mxu0 0
    %932 = vmatprep.mubr.bf16.mxu0 %v504
    %933 = vmatmul.mubr.bf16.gmra.mrb[0].mxu0 %v499
    %v934 = vpop.f32.mrb[0].mxu0
    %v935 = vadd.f32 0.0, %v934
    %v936 = vpop.f32.mrb[0].mxu0
    %v937 = vpop.f32.mrb[0].mxu0
    %v938 = vpop.f32.mrb[0].mxu0
    %939 = vdwg.mxu0
    %s940 = scalar_lea.vmem [#allocation2], 8
    %941 = vst [vmem:[%s940] sm:$0xff] %v935
    %v942 = vld [vmem:[%s0] sm:$0x1]
    %v943 = vld [vmem:[%s0 + $0x1] sm:$0x1]
    %v944 = vadd.f32 %v942, 1.0
    %v945 = vmul.f32 %v944, 8.0
    %v946 = vand.u32 2147483647, %v945
    %v947 = vmul.f32 %v946, %v49
    %v948 = vfloor.f32 %v947
    %v949 = vmul.f32 %v948, 16.0
    %v950 = vsub.f32 %v946, %v949
    %v951 = vmul.f32 %v948, 0.5
    %v952 = vfloor.f32 %v951
    %v953 = vmul.f32 %v952, 2.0
    %v954 = vsub.f32 %v948, %v953
    %vm955 = vcmp.lt.f32.partialorder %v954, 0.5
    %v956 = vsub.f32 16.0, %v950
    %v957 = vsel %vm955, %v950, %v956
    %v958 = vmax.f32 %v957, 0.0
    %v959 = vmin.f32 %v958, 16.0
    %v960 = vadd.f32 %v943, 1.0
    %v961 = vmul.f32 %v960, 8.0
    %v962 = vand.u32 2147483647, %v961
    %v963 = vmul.f32 %v962, %v49
    %v964 = vfloor.f32 %v963
    %v965 = vmul.f32 %v964, 16.0
    %v966 = vsub.f32 %v962, %v965
    %v967 = vmul.f32 %v964, 0.5
    %v968 = vfloor.f32 %v967
    %v969 = vmul.f32 %v968, 2.0
    %v970 = vsub.f32 %v964, %v969
    %vm971 = vcmp.lt.f32.partialorder %v970, 0.5
    %v972 = vsub.f32 16.0, %v966
    %v973 = vsel %vm971, %v966, %v972
    %v974 = vmax.f32 %v973, 0.0
    %v975 = vmin.f32 %v974, 16.0
    %v976 = vlaneseq
    %v977 = vshrl.u32 %v976, 7
    %v978 = vsub.s32 0, %v977
    %v979 = vrot.slane %v959, %v978
    %v980 = vsub.f32 %v82, %v979
    %v981 = vsub.f32 %v87, %v979
    %v982 = vsub.f32 %v92, %v979
    %v983 = vsub.f32 %v97, %v979
    %v984 = vand.u32 2147483647, %v980
    %v985 = vand.u32 2147483647, %v981
    %v986 = vand.u32 2147483647, %v982
    %v987 = vand.u32 2147483647, %v983
    %v988 = vsub.f32 1.0, %v984
    %v989 = vsub.f32 1.0, %v985
    %v990 = vsub.f32 1.0, %v986
    %v991 = vsub.f32 1.0, %v987
    %v992 = vmax.f32 %v988, 0.0
    %v993 = vmax.f32 %v989, 0.0
    %v994 = vmax.f32 %v990, 0.0
    %v995 = vmax.f32 %v991, 0.0
    %v996 = vlaneseq
    %v997 = vshrl.u32 %v996, 7
    %v998 = vsub.s32 0, %v997
    %v999 = vrot.slane %v975, %v998
    %v1000 = vsub.f32 %v122, %v999
    %v1001 = vsub.f32 %v127, %v999
    %v1002 = vsub.f32 %v132, %v999
    %v1003 = vsub.f32 %v137, %v999
    %v1004 = vsub.f32 %v142, %v999
    %v1005 = vsub.f32 %v147, %v999
    %v1006 = vsub.f32 %v152, %v999
    %v1007 = vsub.f32 %v157, %v999
    %v1008 = vsub.f32 %v162, %v999
    %v1009 = vsub.f32 %v167, %v999
    %v1010 = vsub.f32 %v172, %v999
    %v1011 = vsub.f32 %v177, %v999
    %v1012 = vsub.f32 %v182, %v999
    %v1013 = vsub.f32 %v187, %v999
    %v1014 = vsub.f32 %v192, %v999
    %v1015 = vsub.f32 %v197, %v999
    %v1016 = vsub.f32 %v202, %v999
    %v1017 = vand.u32 2147483647, %v1000
    %v1018 = vand.u32 2147483647, %v1001
    %v1019 = vand.u32 2147483647, %v1002
    %v1020 = vand.u32 2147483647, %v1003
    %v1021 = vand.u32 2147483647, %v1004
    %v1022 = vand.u32 2147483647, %v1005
    %v1023 = vand.u32 2147483647, %v1006
    %v1024 = vand.u32 2147483647, %v1007
    %v1025 = vand.u32 2147483647, %v1008
    %v1026 = vand.u32 2147483647, %v1009
    %v1027 = vand.u32 2147483647, %v1010
    %v1028 = vand.u32 2147483647, %v1011
    %v1029 = vand.u32 2147483647, %v1012
    %v1030 = vand.u32 2147483647, %v1013
    %v1031 = vand.u32 2147483647, %v1014
    %v1032 = vand.u32 2147483647, %v1015
    %v1033 = vand.u32 2147483647, %v1016
    %v1034 = vsub.f32 1.0, %v1017
    %v1035 = vsub.f32 1.0, %v1018
    %v1036 = vsub.f32 1.0, %v1019
    %v1037 = vsub.f32 1.0, %v1020
    %v1038 = vsub.f32 1.0, %v1021
    %v1039 = vsub.f32 1.0, %v1022
    %v1040 = vsub.f32 1.0, %v1023
    %v1041 = vsub.f32 1.0, %v1024
    %v1042 = vsub.f32 1.0, %v1025
    %v1043 = vsub.f32 1.0, %v1026
    %v1044 = vsub.f32 1.0, %v1027
    %v1045 = vsub.f32 1.0, %v1028
    %v1046 = vsub.f32 1.0, %v1029
    %v1047 = vsub.f32 1.0, %v1030
    %v1048 = vsub.f32 1.0, %v1031
    %v1049 = vsub.f32 1.0, %v1032
    %v1050 = vsub.f32 1.0, %v1033
    %v1051 = vmax.f32 %v1034, 0.0
    %v1052 = vmax.f32 %v1035, 0.0
    %v1053 = vmax.f32 %v1036, 0.0
    %v1054 = vmax.f32 %v1037, 0.0
    %v1055 = vmax.f32 %v1038, 0.0
    %v1056 = vmax.f32 %v1039, 0.0
    %v1057 = vmax.f32 %v1040, 0.0
    %v1058 = vmax.f32 %v1041, 0.0
    %v1059 = vmax.f32 %v1042, 0.0
    %v1060 = vmax.f32 %v1043, 0.0
    %v1061 = vmax.f32 %v1044, 0.0
    %v1062 = vmax.f32 %v1045, 0.0
    %v1063 = vmax.f32 %v1046, 0.0
    %v1064 = vmax.f32 %v1047, 0.0
    %v1065 = vmax.f32 %v1048, 0.0
    %v1066 = vmax.f32 %v1049, 0.0
    %v1067 = vmax.f32 %v1050, 0.0
    %s1068 = scalar_lea.vmem %s4, 136
    %v1069 = vld [vmem:[%s1068] sm:$0xf]
    %v1070 = vld [vmem:[%s1068 + $0x4] sm:$0xf]
    %v1071 = vld [vmem:[%s1068 + $0x8] sm:$0xf]
    %v1072 = vld [vmem:[%s1068 + $0xc] sm:$0xf]
    %v1073 = vld [vmem:[%s1068 + $0x10] sm:$0xf]
    %v1074 = vld [vmem:[%s1068 + $0x14] sm:$0xf]
    %v1075 = vld [vmem:[%s1068 + $0x18] sm:$0xf]
    %v1076 = vld [vmem:[%s1068 + $0x1c] sm:$0xf]
    %v1077 = vld [vmem:[%s1068 + $0x20] sm:$0xf]
    %v1078 = vld [vmem:[%s1068 + $0x24] sm:$0xf]
    %v1079 = vld [vmem:[%s1068 + $0x28] sm:$0xf]
    %v1080 = vld [vmem:[%s1068 + $0x2c] sm:$0xf]
    %v1081 = vld [vmem:[%s1068 + $0x30] sm:$0xf]
    %v1082 = vld [vmem:[%s1068 + $0x34] sm:$0xf]
    %v1083 = vld [vmem:[%s1068 + $0x38] sm:$0xf]
    %v1084 = vld [vmem:[%s1068 + $0x3c] sm:$0xf]
    %v1085 = vld [vmem:[%s1068 + $0x40] sm:$0xf]
    %v1086 = vpack.c.bf16 %v993, %v992
    %v1087 = vpack.c.bf16 %v995, %v994
    %v1105 = vunpack.c.l.b16 %v1069
    %v1106 = vunpack.c.l.b16 %v1070
    %v1107 = vunpack.c.l.b16 %v1071
    %v1108 = vunpack.c.l.b16 %v1072
    %v1109 = vunpack.c.l.b16 %v1073
    %v1110 = vunpack.c.l.b16 %v1074
    %v1111 = vunpack.c.l.b16 %v1075
    %v1112 = vunpack.c.l.b16 %v1076
    %v1113 = vunpack.c.l.b16 %v1077
    %v1114 = vunpack.c.l.b16 %v1078
    %v1115 = vunpack.c.l.b16 %v1079
    %v1116 = vunpack.c.l.b16 %v1080
    %v1117 = vunpack.c.l.b16 %v1081
    %v1118 = vunpack.c.l.b16 %v1082
    %v1119 = vunpack.c.l.b16 %v1083
    %v1120 = vunpack.c.l.b16 %v1084
    %v1121 = vunpack.c.l.b16 %v1085
    %v1122 = vpack.c.b16 %v1106, %v1105
    %v1123 = vpack.c.b16 %v1108, %v1107
    %v1124 = vpack.c.b16 %v1110, %v1109
    %v1125 = vpack.c.b16 %v1112, %v1111
    %v1126 = vpack.c.b16 %v1114, %v1113
    %v1127 = vpack.c.b16 %v1116, %v1115
    %v1128 = vpack.c.b16 %v1118, %v1117
    %v1129 = vpack.c.b16 %v1120, %v1119
    %v1130 = vpack.c.b16 %v1121, %v1121
    %v1132 = vsel %vm338, %v1122, 0
    %v1135 = vsel %vm338, %v1123, 0
    %v1138 = vsel %vm338, %v1124, 0
    %v1141 = vsel %vm338, %v1125, 0
    %v1144 = vsel %vm338, %v1126, 0
    %v1147 = vsel %vm338, %v1127, 0
    %v1150 = vsel %vm338, %v1128, 0
    %v1153 = vsel %vm338, %v1129, 0
    %v1156 = vsel %vm338, %v1130, 0
    %1158 = vmatprep.subr.bf16.mxu0 0
    %1159 = vmatpush1.bf16.msra.mxu0 %v1086
    %1160 = vmatprep.subr.bf16.mxu0 0
    %1161 = vmatpush1.bf16.msra.mxu0 %v1087
    %1162 = vmatprep.subr.bf16.mxu0 0
    %1163 = vmatpush1.bf16.msra.mxu0 0
    %1164 = vmatprep.subr.bf16.mxu0 0
    %1165 = vmatpush1.bf16.msra.mxu0 0
    %1166 = vmatprep.subr.bf16.mxu0 0
    %1167 = vmatpush1.bf16.msra.mxu0 0
    %1168 = vmatprep.subr.bf16.mxu0 0
    %1169 = vmatpush1.bf16.msra.mxu0 0
    %1170 = vmatprep.subr.bf16.mxu0 0
    %1171 = vmatpush1.bf16.msra.mxu0 0
    %1172 = vmatprep.subr.bf16.mxu0 0
    %1173 = vmatpush1.bf16.msra.mxu0 0
    %1174 = vmatprep.subr.bf16.mxu0 0
    %1175 = vmatpush1.bf16.msra.mxu0 0
    %1176 = vmatprep.subr.bf16.mxu0 0
    %1177 = vmatpush1.bf16.msra.mxu0 0
    %1178 = vmatprep.subr.bf16.mxu0 0
    %1179 = vmatpush1.bf16.msra.mxu0 0
    %1180 = vmatprep.subr.bf16.mxu0 0
    %1181 = vmatpush1.bf16.msra.mxu0 0
    %1182 = vmatprep.subr.bf16.mxu0 0
    %1183 = vmatpush1.bf16.msra.mxu0 0
    %1184 = vmatprep.subr.bf16.mxu0 0
    %1185 = vmatpush1.bf16.msra.mxu0 0
    %1186 = vmatprep.subr.bf16.mxu0 0
    %1187 = vmatpush1.bf16.msra.mxu0 0
    %1188 = vmatprep.subr.bf16.mxu0 0
    %1189 = vmatpush1.bf16.msra.mxu0 0
    %1190 = vmatprep.mubr.bf16.mxu0 0
    %1191 = vmatmul.mubr.bf16.gmra.mrb[0].mxu0 %v1132
    %v1192 = vpop.f32.mrb[0].mxu0
    %v1193 = vadd.f32 0.0, %v1192
    %v1194 = vpop.f32.mrb[0].mxu0
    %v1195 = vpop.f32.mrb[0].mxu0
    %v1196 = vadd.f32 0.0, %v1195
    %v1197 = vpop.f32.mrb[0].mxu0
    %1198 = vmatprep.mubr.bf16.mxu0 0
    %1199 = vmatmul.mubr.bf16.gmra.mrb[0].mxu0 %v1135
    %v1200 = vpop.f32.mrb[0].mxu0
    %v1201 = vadd.f32 0.0, %v1200
    %v1202 = vpop.f32.mrb[0].mxu0
    %v1203 = vpop.f32.mrb[0].mxu0
    %v1204 = vadd.f32 0.0, %v1203
    %v1205 = vpop.f32.mrb[0].mxu0
    %1206 = vmatprep.mubr.bf16.mxu0 0
    %1207 = vmatmul.mubr.bf16.gmra.mrb[0].mxu0 %v1138
    %v1208 = vpop.f32.mrb[0].mxu0
    %v1209 = vadd.f32 0.0, %v1208
    %v1210 = vpop.f32.mrb[0].mxu0
    %v1211 = vpop.f32.mrb[0].mxu0
    %v1212 = vadd.f32 0.0, %v1211
    %v1213 = vpop.f32.mrb[0].mxu0
    %1214 = vmatprep.mubr.bf16.mxu0 0
    %1215 = vmatmul.mubr.bf16.gmra.mrb[0].mxu0 %v1141
    %v1216 = vpop.f32.mrb[0].mxu0
    %v1217 = vadd.f32 0.0, %v1216
    %v1218 = vpop.f32.mrb[0].mxu0
    %v1219 = vpop.f32.mrb[0].mxu0
    %v1220 = vadd.f32 0.0, %v1219
    %v1221 = vpop.f32.mrb[0].mxu0
    %1222 = vmatprep.mubr.bf16.mxu0 0
    %1223 = vmatmul.mubr.bf16.gmra.mrb[0].mxu0 %v1144
    %v1224 = vpop.f32.mrb[0].mxu0
    %v1225 = vadd.f32 0.0, %v1224
    %v1226 = vpop.f32.mrb[0].mxu0
    %v1227 = vpop.f32.mrb[0].mxu0
    %v1228 = vadd.f32 0.0, %v1227
    %v1229 = vpop.f32.mrb[0].mxu0
    %1230 = vmatprep.mubr.bf16.mxu0 0
    %1231 = vmatmul.mubr.bf16.gmra.mrb[0].mxu0 %v1147
    %v1232 = vpop.f32.mrb[0].mxu0
    %v1233 = vadd.f32 0.0, %v1232
    %v1234 = vpop.f32.mrb[0].mxu0
    %v1235 = vpop.f32.mrb[0].mxu0
    %v1236 = vadd.f32 0.0, %v1235
    %v1237 = vpop.f32.mrb[0].mxu0
    %1238 = vmatprep.mubr.bf16.mxu0 0
    %1239 = vmatmul.mubr.bf16.gmra.mrb[0].mxu0 %v1150
    %v1240 = vpop.f32.mrb[0].mxu0
    %v1241 = vadd.f32 0.0, %v1240
    %v1242 = vpop.f32.mrb[0].mxu0
    %v1243 = vpop.f32.mrb[0].mxu0
    %v1244 = vadd.f32 0.0, %v1243
    %v1245 = vpop.f32.mrb[0].mxu0
    %1246 = vmatprep.mubr.bf16.mxu0 0
    %1247 = vmatmul.mubr.bf16.gmra.mrb[0].mxu0 %v1153
    %v1248 = vpop.f32.mrb[0].mxu0
    %v1249 = vadd.f32 0.0, %v1248
    %v1250 = vpop.f32.mrb[0].mxu0
    %v1251 = vpop.f32.mrb[0].mxu0
    %v1252 = vadd.f32 0.0, %v1251
    %v1253 = vpop.f32.mrb[0].mxu0
    %1254 = vmatprep.mubr.bf16.mxu0 0
    %1255 = vmatmul.mubr.bf16.gmra.mrb[0].mxu0 %v1156
    %v1256 = vpop.f32.mrb[0].mxu0
    %v1257 = vadd.f32 0.0, %v1256
    %v1258 = vpop.f32.mrb[0].mxu0
    %v1259 = vpop.f32.mrb[0].mxu0
    %v1260 = vpop.f32.mrb[0].mxu0
    %1261 = vdwg.mxu0
    %v1262 = vmul.f32 %v1193, %v1051
    %v1263 = vmul.f32 %v1196, %v1052
    %v1264 = vmul.f32 %v1201, %v1053
    %v1265 = vmul.f32 %v1204, %v1054
    %v1266 = vmul.f32 %v1209, %v1055
    %v1267 = vmul.f32 %v1212, %v1056
    %v1268 = vmul.f32 %v1217, %v1057
    %v1269 = vmul.f32 %v1220, %v1058
    %v1270 = vmul.f32 %v1225, %v1059
    %v1271 = vmul.f32 %v1228, %v1060
    %v1272 = vmul.f32 %v1233, %v1061
    %v1273 = vmul.f32 %v1236, %v1062
    %v1274 = vmul.f32 %v1241, %v1063
    %v1275 = vmul.f32 %v1244, %v1064
    %v1276 = vmul.f32 %v1249, %v1065
    %v1277 = vmul.f32 %v1252, %v1066
    %v1278 = vmul.f32 %v1257, %v1067
    %v1279 = vpack.c.bf16 %v1263, %v1262
    %v1280 = vpack.c.bf16 %v1265, %v1264
    %v1281 = vpack.c.bf16 %v1267, %v1266
    %v1282 = vpack.c.bf16 %v1269, %v1268
    %v1283 = vpack.c.bf16 %v1271, %v1270
    %v1284 = vpack.c.bf16 %v1273, %v1272
    %v1285 = vpack.c.bf16 %v1275, %v1274
    %v1286 = vpack.c.bf16 %v1277, %v1276
    %v1287 = vpack.c.bf16 %v1278, %v1278
    %v1289 = vsel %vm506, %v1287, 0
    %1291 = vmatprep.subr.bf16.mxu0 0
    %1292 = vmatpush1.bf16.msra.mxu0 %v1279
    %1293 = vmatprep.subr.bf16.mxu0 0
    %1294 = vmatpush1.bf16.msra.mxu0 %v1280
    %1295 = vmatprep.subr.bf16.mxu0 0
    %1296 = vmatpush1.bf16.msra.mxu0 %v1281
    %1297 = vmatprep.subr.bf16.mxu0 0
    %1298 = vmatpush1.bf16.msra.mxu0 %v1282
    %1299 = vmatprep.subr.bf16.mxu0 0
    %1300 = vmatpush1.bf16.msra.mxu0 %v1283
    %1301 = vmatprep.subr.bf16.mxu0 0
    %1302 = vmatpush1.bf16.msra.mxu0 %v1284
    %1303 = vmatprep.subr.bf16.mxu0 0
    %1304 = vmatpush1.bf16.msra.mxu0 %v1285
    %1305 = vmatprep.subr.bf16.mxu0 0
    %1306 = vmatpush1.bf16.msra.mxu0 %v1286
    %1307 = vmatprep.subr.bf16.mxu0 0
    %1308 = vmatpush1.bf16.msra.mxu0 %v1289
    %1309 = vmatprep.subr.bf16.mxu0 0
    %1310 = vmatpush1.bf16.msra.mxu0 0
    %1311 = vmatprep.subr.bf16.mxu0 0
    %1312 = vmatpush1.bf16.msra.mxu0 0
    %1313 = vmatprep.subr.bf16.mxu0 0
    %1314 = vmatpush1.bf16.msra.mxu0 0
    %1315 = vmatprep.subr.bf16.mxu0 0
    %1316 = vmatpush1.bf16.msra.mxu0 0
    %1317 = vmatprep.subr.bf16.mxu0 0
    %1318 = vmatpush1.bf16.msra.mxu0 0
    %1319 = vmatprep.subr.bf16.mxu0 0
    %1320 = vmatpush1.bf16.msra.mxu0 0
    %1321 = vmatprep.subr.bf16.mxu0 0
    %1322 = vmatpush1.bf16.msra.mxu0 0
    %1323 = vmatprep.mubr.bf16.mxu0 %v504
    %1324 = vmatmul.mubr.bf16.gmra.mrb[0].mxu0 %v499
    %v1325 = vpop.f32.mrb[0].mxu0
    %v1326 = vadd.f32 0.0, %v1325
    %v1327 = vpop.f32.mrb[0].mxu0
    %v1328 = vpop.f32.mrb[0].mxu0
    %v1329 = vpop.f32.mrb[0].mxu0
    %1330 = vdwg.mxu0
    %s1331 = scalar_lea.vmem [#allocation2], 16
    %1332 = vst [vmem:[%s1331] sm:$0xff] %v1326
    // Predicated region
    $region22: #{tpu_custom_call.1} parent=1 // pred_check
      _
    $region23: #{tpu_custom_call.1} parent=1 // pred_check_branch
      %1334 = sbr.rel (0) target = $region25
    $region24: #{tpu_custom_call.1} parent=1 // pred_region
      %s1336 = ssub.s32 384, 384
      %1337 = vsyncadd [#allocation3], %s1336
      %s1338 = sshll.u32 [#allocation2], 4
      %s1339 = int_to_ptr.vmem [resolvable:$true] %s1338
      %1344 = dma.vmem_to_hbm [thread:$0]  %s1339, 384, %s5, [#allocation3], 128, 128, 8
    $region25: #{tpu_custom_call.1} parent=1 // pred_fallthru
      _
    // Predicated region
    $region26: #{tpu_custom_call.1} parent=1 // pred_check
      _
    $region27: #{tpu_custom_call.1} parent=1 // pred_check_branch
      %1346 = sbr.rel (0) target = $region29
    $region28: #{tpu_custom_call.1} parent=1 // pred_region
      %1347 = dma.done [#allocation3], 384
    $region29: #{tpu_custom_call.1} parent=1 // pred_fallthru
      _
    %1348 = vsyncpa [#allocation3], 1

</llo_original>
